<compile_context>
chip_gen: v7x
topology: tpu7x:2x2x1
jax: 0.10.0
libtpu: 0.0.40
codegen_flags: <defaults>
</compile_context>

<pallas_src>
import jax
import jax.numpy as jnp
from jax import lax
from jax.experimental import pallas as pl
from jax.experimental.pallas import tpu as pltpu

_TEMP_BLOCKS = 10            # ~peak live full-block temporaries inside the kernel
_MIN_BLOCK_BYTES = 512 * 1024


def _loss_partial_kernel(op_ref, gp_ref, out_ref):
    # op_ref / gp_ref: (BNC, H, W) un-padded image block in VMEM (input dtype).
    op = op_ref[...]
    gp = gp_ref[...]
    _, hh, ww = op.shape

    # Border masks at broadcast-minimal (1, H, W) shape, built once per grid step.
    row = lax.broadcasted_iota(jnp.int32, (1, hh, ww), 1)
    col = lax.broadcasted_iota(jnp.int32, (1, hh, ww), 2)
    not_first_row = row > 0
    not_last_row = row < hh - 1
    not_first_col = col > 0
    not_last_col = col < ww - 1

    # Zero-padded neighbor views via XLU rolls + VPU border masks (no unaligned slices).
    def nb_up(x):   # y[i,j] = x[i-1,j], zero at i == 0
        return jnp.where(not_first_row, pltpu.roll(x, 1, axis=1), 0.0)

    def nb_dn(x):   # y[i,j] = x[i+1,j], zero at i == H-1
        return jnp.where(not_last_row, pltpu.roll(x, hh - 1, axis=1), 0.0)

    def nb_lf(x):   # y[i,j] = x[i,j-1], zero at j == 0
        return jnp.where(not_first_col, pltpu.roll(x, 1, axis=2), 0.0)

    def nb_rt(x):   # y[i,j] = x[i,j+1], zero at j == W-1
        return jnp.where(not_last_col, pltpu.roll(x, ww - 1, axis=2), 0.0)

    # --- Phase 1: L1 + Laplacian. Lap is linear => Lap(out) - Lap(gt) == Lap(out - gt).
    d = op - gp
    s_l1 = jnp.sum(jnp.abs(d), dtype=jnp.float32)
    lap_d = (nb_up(d) + nb_dn(d) + nb_lf(d) + nb_rt(d)) - 4.0 * d
    s_lap = jnp.sum(jnp.abs(lap_d), dtype=jnp.float32)

    # --- Phases 2/3: Sobel magnitude per input (nonlinear inner abs), separable form.
    def sobel_abs(x):
        tx = nb_rt(x) - nb_lf(x)                 # horizontal central difference
        ty = nb_dn(x) - nb_up(x)                 # vertical central difference
        gx = nb_up(tx) + 2.0 * tx + nb_dn(tx)    # vertical [1,2,1] smoothing
        gy = nb_lf(ty) + 2.0 * ty + nb_rt(ty)    # horizontal [1,2,1] smoothing
        return jnp.abs(gx) + jnp.abs(gy)

    s_sob = jnp.sum(jnp.abs(sobel_abs(op) - sobel_abs(gp)), dtype=jnp.float32)

    # Pack the three partial sums into a lane-aligned (1, 8, 128) output tile.
    sub = lax.broadcasted_iota(jnp.int32, (1, 8, 128), 1)
    lane = lax.broadcasted_iota(jnp.int32, (1, 8, 128), 2)
    tile = jnp.where((sub == 0) & (lane == 0), s_l1, 0.0)
    tile = jnp.where((sub == 0) & (lane == 1), s_lap, tile)
    tile = jnp.where((sub == 0) & (lane == 2), s_sob, tile)
    out_ref[...] = tile


def _vmem_limit_bytes():
    """Generation-aware scoped-VMEM limit (v7x: 64 MiB physical; v5e/v6e: 128 MiB)."""
    cap = 128 * 1024 * 1024
    try:
        cap = int(getattr(pltpu.get_tpu_info(), "vmem_capacity_bytes", cap)) or cap
    except Exception:
        pass
    return min((cap * 3) // 4, 100 * 1024 * 1024)


def _choose_tiling(nc, per_ch_cost, budget):
    """Return (channels per block, padded channel count that is a multiple of it)."""
    max_fit = max(1, int(budget // per_ch_cost))
    divisors = [d for d in range(1, nc + 1) if nc % d == 0 and d <= max_fit]
    best_div = max(divisors)
    if best_div * per_ch_cost < _MIN_BLOCK_BYTES and best_div < max_fit < nc:
        # Awkward divisor structure (e.g. prime nc): take the budget-bound block and
        # zero-pad the channel axis (identical zero channels add exactly 0 to all sums).
        bnc = max_fit
        return bnc, pl.cdiv(nc, bnc) * bnc

    # Among fitting divisors prefer >=4 grid steps (hides pipeline prologue/epilogue)
    # and an even step count (balanced 2-TensorCore split on v7x), but never shrink
    # blocks below _MIN_BLOCK_BYTES just to add steps.
    def key(d):
        g = nc // d
        big = (d * per_ch_cost >= _MIN_BLOCK_BYTES) or (d == best_div)
        return (g >= 4 and big, g % 2 == 0 and big, d)

    return max(divisors, key=key), nc


def my_loss(out_img, gt_img):
    """out_img, gt_img: NCHW float arrays of identical shape (f32 or bf16)."""
    assert out_img.shape == gt_img.shape
    n, c, h, w = out_img.shape
    nc = n * c

    # Fold channels into batch (depthwise stencils) -- a free, contiguous reshape.
    op = out_img.reshape(nc, h, w)
    gp = gt_img.reshape(nc, h, w)

    itemsize = jnp.dtype(op.dtype).itemsize
    # Per-channel VMEM cost: 2 inputs x double-buffered pipeline + live temporaries
    # (the kernel computes in the input dtype; reductions accumulate in f32).
    per_ch_cost = h * w * (4 * itemsize + _TEMP_BLOCKS * itemsize)

    vmem_limit = _vmem_limit_bytes()
    budget = (vmem_limit * 4) // 5          # keep ~20% headroom inside the limit
    bnc, nc_pad = _choose_tiling(nc, per_ch_cost, budget)
    if nc_pad != nc:
        pad = nc_pad - nc
        op = jnp.pad(op, ((0, pad), (0, 0), (0, 0)))
        gp = jnp.pad(gp, ((0, pad), (0, 0), (0, 0)))
    grid_n = nc_pad // bnc

    total_elems = n * c * h * w
    cost = pl.CostEstimate(
        flops=80 * nc_pad * h * w,
        transcendentals=0,
        bytes_accessed=2 * nc_pad * h * w * itemsize + grid_n * 8 * 128 * 4,
    )

    partials = pl.pallas_call(
        _loss_partial_kernel,
        out_shape=jax.ShapeDtypeStruct((grid_n, 8, 128), jnp.float32),
        grid_spec=pltpu.PrefetchScalarGridSpec(
            num_scalar_prefetch=0,
            grid=(grid_n,),
            # Default Buffered(2) pipelining: arithmetic intensity is high enough that
            # DMA is already hidden; spare VMEM goes to larger blocks instead.
            in_specs=[
                pl.BlockSpec((bnc, h, w), lambda b: (b, 0, 0)),
                pl.BlockSpec((bnc, h, w), lambda b: (b, 0, 0)),
            ],
            out_specs=pl.BlockSpec((1, 8, 128), lambda b: (b, 0, 0)),
        ),
        compiler_params=pltpu.CompilerParams(
            dimension_semantics=("parallel",),
            vmem_limit_bytes=vmem_limit,
        ),
        cost_estimate=cost,
    )(op, gp)

    # Final tiny reduction + 'mean' normalization in plain JAX (padded channels add 0).
    sums = jnp.sum(partials[:, 0, :3], axis=0)
    denom = jnp.float32(total_elems)  # nn.L1Loss 'mean'; stencil outputs are same-sized
    l1 = sums[0] / denom
    lap_l1 = sums[1] / denom
    sob_l1 = sums[2] / denom
    tot = l1 + 0.5 * lap_l1 + 0.2 * sob_l1
    return {'loss': tot, 'L1': l1, 'lap_l1': lap_l1, 'sob_l1': sob_l1}


if __name__ == "__main__":
    key = jax.random.PRNGKey(0)
    k1, k2 = jax.random.split(key)
    # Laplacian(3) in the reference implies 3-channel (RGB) images.
    out_img = jax.random.uniform(k1, (2, 3, 16, 16), dtype=jnp.float32)
    gt_img = jax.random.uniform(k2, (2, 3, 16, 16), dtype=jnp.float32)

    res = jax.jit(my_loss)(out_img, gt_img)
    jax.block_until_ready(res['loss'])
    print("KERNEL_OK")
</pallas_src>

<mosaic_0001>
module attributes {stable_mosaic.version = 11 : i64} {
  func.func @_loss_partial_kernel(%arg0: i32, %arg1: memref<6x16x16xf32, #tpu.memory_space<vmem>>, %arg2: memref<6x16x16xf32, #tpu.memory_space<vmem>>, %arg3: memref<1x8x128xf32, #tpu.memory_space<vmem>>) attributes {dimension_semantics = [#tpu.dimension_semantics<parallel>], iteration_bounds = array<i64: 1>, scalar_prefetch = 0 : i64, scratch_operands = 0 : i64, tpu.core_type = #tpu.core_type<tc>, window_params = [{transform_indices = @transform_0, window_bounds = array<i64: 6, 16, 16>}, {transform_indices = @transform_1, window_bounds = array<i64: 6, 16, 16>}, {transform_indices = @transform_2, window_bounds = array<i64: 1, 8, 128>}]} {
    %c0 = arith.constant 0 : index
    %c0_0 = arith.constant 0 : index
    %c0_1 = arith.constant 0 : index
    %0 = vector.load %arg1[%c0, %c0_0, %c0_1] : memref<6x16x16xf32, #tpu.memory_space<vmem>>, vector<6x16x16xf32>
    %c0_2 = arith.constant 0 : index
    %c0_3 = arith.constant 0 : index
    %c0_4 = arith.constant 0 : index
    %1 = vector.load %arg2[%c0_2, %c0_3, %c0_4] : memref<6x16x16xf32, #tpu.memory_space<vmem>>, vector<6x16x16xf32>
    %2 = tpu.iota {dimensions = array<i32: 1>} : vector<1x16x16xi32>
    %3 = tpu.iota {dimensions = array<i32: 2>} : vector<1x16x16xi32>
    %c0_i32 = arith.constant 0 : i32
    %4 = vector.broadcast %c0_i32 : i32 to vector<1x16x16xi32>
    %5 = arith.cmpi sgt, %2, %4 : vector<1x16x16xi32>
    %c15_i32 = arith.constant 15 : i32
    %6 = vector.broadcast %c15_i32 : i32 to vector<1x16x16xi32>
    %7 = arith.cmpi slt, %2, %6 : vector<1x16x16xi32>
    %c0_i32_5 = arith.constant 0 : i32
    %8 = vector.broadcast %c0_i32_5 : i32 to vector<1x16x16xi32>
    %9 = arith.cmpi sgt, %3, %8 : vector<1x16x16xi32>
    %c15_i32_6 = arith.constant 15 : i32
    %10 = vector.broadcast %c15_i32_6 : i32 to vector<1x16x16xi32>
    %11 = arith.cmpi slt, %3, %10 : vector<1x16x16xi32>
    %12 = arith.subf %0, %1 : vector<6x16x16xf32>
    %13 = math.absf %12 : vector<6x16x16xf32>
    %14 = vector.shape_cast %13 : vector<6x16x16xf32> to vector<1x6x16x16xf32>
    %cst = arith.constant dense<0.000000e+00> : vector<1xf32>
    %15 = vector.multi_reduction <add>, %14, %cst [1, 2, 3] : vector<1x6x16x16xf32> to vector<1xf32>
    %16 = vector.shape_cast %15 : vector<1xf32> to vector<1x1x1x1xf32>
    %17 = vector.extract %16[0, 0, 0, 0] : f32 from vector<1x1x1x1xf32>
    %c1_i32 = arith.constant 1 : i32
    %18 = tpu.dynamic_rotate %12 by %c1_i32 dim 1 : vector<6x16x16xf32>, i32 -> vector<6x16x16xf32>
    %cst_7 = arith.constant 0.000000e+00 : f32
    %19 = vector.shape_cast %5 : vector<1x16x16xi1> to vector<1x16x16xi1>
    %20 = vector.broadcast %19 : vector<1x16x16xi1> to vector<6x16x16xi1>
    %21 = vector.broadcast %cst_7 : f32 to vector<6x16x16xf32>
    %22 = arith.select %20, %18, %21 : vector<6x16x16xi1>, vector<6x16x16xf32>
    %c15_i32_8 = arith.constant 15 : i32
    %23 = tpu.dynamic_rotate %12 by %c15_i32_8 dim 1 : vector<6x16x16xf32>, i32 -> vector<6x16x16xf32>
    %cst_9 = arith.constant 0.000000e+00 : f32
    %24 = vector.shape_cast %7 : vector<1x16x16xi1> to vector<1x16x16xi1>
    %25 = vector.broadcast %24 : vector<1x16x16xi1> to vector<6x16x16xi1>
    %26 = vector.broadcast %cst_9 : f32 to vector<6x16x16xf32>
    %27 = arith.select %25, %23, %26 : vector<6x16x16xi1>, vector<6x16x16xf32>
    %28 = arith.addf %22, %27 : vector<6x16x16xf32>
    %c1_i32_10 = arith.constant 1 : i32
    %29 = tpu.dynamic_rotate %12 by %c1_i32_10 dim 2 : vector<6x16x16xf32>, i32 -> vector<6x16x16xf32>
    %cst_11 = arith.constant 0.000000e+00 : f32
    %30 = vector.shape_cast %9 : vector<1x16x16xi1> to vector<1x16x16xi1>
    %31 = vector.broadcast %30 : vector<1x16x16xi1> to vector<6x16x16xi1>
    %32 = vector.broadcast %cst_11 : f32 to vector<6x16x16xf32>
    %33 = arith.select %31, %29, %32 : vector<6x16x16xi1>, vector<6x16x16xf32>
    %34 = arith.addf %28, %33 : vector<6x16x16xf32>
    %c15_i32_12 = arith.constant 15 : i32
    %35 = tpu.dynamic_rotate %12 by %c15_i32_12 dim 2 : vector<6x16x16xf32>, i32 -> vector<6x16x16xf32>
    %cst_13 = arith.constant 0.000000e+00 : f32
    %36 = vector.shape_cast %11 : vector<1x16x16xi1> to vector<1x16x16xi1>
    %37 = vector.broadcast %36 : vector<1x16x16xi1> to vector<6x16x16xi1>
    %38 = vector.broadcast %cst_13 : f32 to vector<6x16x16xf32>
    %39 = arith.select %37, %35, %38 : vector<6x16x16xi1>, vector<6x16x16xf32>
    %40 = arith.addf %34, %39 : vector<6x16x16xf32>
    %cst_14 = arith.constant 4.000000e+00 : f32
    %41 = vector.broadcast %cst_14 : f32 to vector<6x16x16xf32>
    %42 = arith.mulf %41, %12 : vector<6x16x16xf32>
    %43 = arith.subf %40, %42 : vector<6x16x16xf32>
    %44 = math.absf %43 : vector<6x16x16xf32>
    %45 = vector.shape_cast %44 : vector<6x16x16xf32> to vector<1x6x16x16xf32>
    %cst_15 = arith.constant dense<0.000000e+00> : vector<1xf32>
    %46 = vector.multi_reduction <add>, %45, %cst_15 [1, 2, 3] : vector<1x6x16x16xf32> to vector<1xf32>
    %47 = vector.shape_cast %46 : vector<1xf32> to vector<1x1x1x1xf32>
    %48 = vector.extract %47[0, 0, 0, 0] : f32 from vector<1x1x1x1xf32>
    %c15_i32_16 = arith.constant 15 : i32
    %49 = tpu.dynamic_rotate %0 by %c15_i32_16 dim 2 : vector<6x16x16xf32>, i32 -> vector<6x16x16xf32>
    %cst_17 = arith.constant 0.000000e+00 : f32
    %50 = vector.shape_cast %11 : vector<1x16x16xi1> to vector<1x16x16xi1>
    %51 = vector.broadcast %50 : vector<1x16x16xi1> to vector<6x16x16xi1>
    %52 = vector.broadcast %cst_17 : f32 to vector<6x16x16xf32>
    %53 = arith.select %51, %49, %52 : vector<6x16x16xi1>, vector<6x16x16xf32>
    %c1_i32_18 = arith.constant 1 : i32
    %54 = tpu.dynamic_rotate %0 by %c1_i32_18 dim 2 : vector<6x16x16xf32>, i32 -> vector<6x16x16xf32>
    %cst_19 = arith.constant 0.000000e+00 : f32
    %55 = vector.shape_cast %9 : vector<1x16x16xi1> to vector<1x16x16xi1>
    %56 = vector.broadcast %55 : vector<1x16x16xi1> to vector<6x16x16xi1>
    %57 = vector.broadcast %cst_19 : f32 to vector<6x16x16xf32>
    %58 = arith.select %56, %54, %57 : vector<6x16x16xi1>, vector<6x16x16xf32>
    %59 = arith.subf %53, %58 : vector<6x16x16xf32>
    %c15_i32_20 = arith.constant 15 : i32
    %60 = tpu.dynamic_rotate %0 by %c15_i32_20 dim 1 : vector<6x16x16xf32>, i32 -> vector<6x16x16xf32>
    %cst_21 = arith.constant 0.000000e+00 : f32
    %61 = vector.shape_cast %7 : vector<1x16x16xi1> to vector<1x16x16xi1>
    %62 = vector.broadcast %61 : vector<1x16x16xi1> to vector<6x16x16xi1>
    %63 = vector.broadcast %cst_21 : f32 to vector<6x16x16xf32>
    %64 = arith.select %62, %60, %63 : vector<6x16x16xi1>, vector<6x16x16xf32>
    %c1_i32_22 = arith.constant 1 : i32
    %65 = tpu.dynamic_rotate %0 by %c1_i32_22 dim 1 : vector<6x16x16xf32>, i32 -> vector<6x16x16xf32>
    %cst_23 = arith.constant 0.000000e+00 : f32
    %66 = vector.shape_cast %5 : vector<1x16x16xi1> to vector<1x16x16xi1>
    %67 = vector.broadcast %66 : vector<1x16x16xi1> to vector<6x16x16xi1>
    %68 = vector.broadcast %cst_23 : f32 to vector<6x16x16xf32>
    %69 = arith.select %67, %65, %68 : vector<6x16x16xi1>, vector<6x16x16xf32>
    %70 = arith.subf %64, %69 : vector<6x16x16xf32>
    %c1_i32_24 = arith.constant 1 : i32
    %71 = tpu.dynamic_rotate %59 by %c1_i32_24 dim 1 : vector<6x16x16xf32>, i32 -> vector<6x16x16xf32>
    %cst_25 = arith.constant 0.000000e+00 : f32
    %72 = vector.shape_cast %5 : vector<1x16x16xi1> to vector<1x16x16xi1>
    %73 = vector.broadcast %72 : vector<1x16x16xi1> to vector<6x16x16xi1>
    %74 = vector.broadcast %cst_25 : f32 to vector<6x16x16xf32>
    %75 = arith.select %73, %71, %74 : vector<6x16x16xi1>, vector<6x16x16xf32>
    %cst_26 = arith.constant 2.000000e+00 : f32
    %76 = vector.broadcast %cst_26 : f32 to vector<6x16x16xf32>
    %77 = arith.mulf %76, %59 : vector<6x16x16xf32>
    %78 = arith.addf %75, %77 : vector<6x16x16xf32>
    %c15_i32_27 = arith.constant 15 : i32
    %79 = tpu.dynamic_rotate %59 by %c15_i32_27 dim 1 : vector<6x16x16xf32>, i32 -> vector<6x16x16xf32>
    %cst_28 = arith.constant 0.000000e+00 : f32
    %80 = vector.shape_cast %7 : vector<1x16x16xi1> to vector<1x16x16xi1>
    %81 = vector.broadcast %80 : vector<1x16x16xi1> to vector<6x16x16xi1>
    %82 = vector.broadcast %cst_28 : f32 to vector<6x16x16xf32>
    %83 = arith.select %81, %79, %82 : vector<6x16x16xi1>, vector<6x16x16xf32>
    %84 = arith.addf %78, %83 : vector<6x16x16xf32>
    %c1_i32_29 = arith.constant 1 : i32
    %85 = tpu.dynamic_rotate %70 by %c1_i32_29 dim 2 : vector<6x16x16xf32>, i32 -> vector<6x16x16xf32>
    %cst_30 = arith.constant 0.000000e+00 : f32
    %86 = vector.shape_cast %9 : vector<1x16x16xi1> to vector<1x16x16xi1>
    %87 = vector.broadcast %86 : vector<1x16x16xi1> to vector<6x16x16xi1>
    %88 = vector.broadcast %cst_30 : f32 to vector<6x16x16xf32>
    %89 = arith.select %87, %85, %88 : vector<6x16x16xi1>, vector<6x16x16xf32>
    %cst_31 = arith.constant 2.000000e+00 : f32
    %90 = vector.broadcast %cst_31 : f32 to vector<6x16x16xf32>
    %91 = arith.mulf %90, %70 : vector<6x16x16xf32>
    %92 = arith.addf %89, %91 : vector<6x16x16xf32>
    %c15_i32_32 = arith.constant 15 : i32
    %93 = tpu.dynamic_rotate %70 by %c15_i32_32 dim 2 : vector<6x16x16xf32>, i32 -> vector<6x16x16xf32>
    %cst_33 = arith.constant 0.000000e+00 : f32
    %94 = vector.shape_cast %11 : vector<1x16x16xi1> to vector<1x16x16xi1>
    %95 = vector.broadcast %94 : vector<1x16x16xi1> to vector<6x16x16xi1>
    %96 = vector.broadcast %cst_33 : f32 to vector<6x16x16xf32>
    %97 = arith.select %95, %93, %96 : vector<6x16x16xi1>, vector<6x16x16xf32>
    %98 = arith.addf %92, %97 : vector<6x16x16xf32>
    %99 = math.absf %84 : vector<6x16x16xf32>
    %100 = math.absf %98 : vector<6x16x16xf32>
    %101 = arith.addf %99, %100 : vector<6x16x16xf32>
    %c15_i32_34 = arith.constant 15 : i32
    %102 = tpu.dynamic_rotate %1 by %c15_i32_34 dim 2 : vector<6x16x16xf32>, i32 -> vector<6x16x16xf32>
    %cst_35 = arith.constant 0.000000e+00 : f32
    %103 = vector.shape_cast %11 : vector<1x16x16xi1> to vector<1x16x16xi1>
    %104 = vector.broadcast %103 : vector<1x16x16xi1> to vector<6x16x16xi1>
    %105 = vector.broadcast %cst_35 : f32 to vector<6x16x16xf32>
    %106 = arith.select %104, %102, %105 : vector<6x16x16xi1>, vector<6x16x16xf32>
    %c1_i32_36 = arith.constant 1 : i32
    %107 = tpu.dynamic_rotate %1 by %c1_i32_36 dim 2 : vector<6x16x16xf32>, i32 -> vector<6x16x16xf32>
    %cst_37 = arith.constant 0.000000e+00 : f32
    %108 = vector.shape_cast %9 : vector<1x16x16xi1> to vector<1x16x16xi1>
    %109 = vector.broadcast %108 : vector<1x16x16xi1> to vector<6x16x16xi1>
    %110 = vector.broadcast %cst_37 : f32 to vector<6x16x16xf32>
    %111 = arith.select %109, %107, %110 : vector<6x16x16xi1>, vector<6x16x16xf32>
    %112 = arith.subf %106, %111 : vector<6x16x16xf32>
    %c15_i32_38 = arith.constant 15 : i32
    %113 = tpu.dynamic_rotate %1 by %c15_i32_38 dim 1 : vector<6x16x16xf32>, i32 -> vector<6x16x16xf32>
    %cst_39 = arith.constant 0.000000e+00 : f32
    %114 = vector.shape_cast %7 : vector<1x16x16xi1> to vector<1x16x16xi1>
    %115 = vector.broadcast %114 : vector<1x16x16xi1> to vector<6x16x16xi1>
    %116 = vector.broadcast %cst_39 : f32 to vector<6x16x16xf32>
    %117 = arith.select %115, %113, %116 : vector<6x16x16xi1>, vector<6x16x16xf32>
    %c1_i32_40 = arith.constant 1 : i32
    %118 = tpu.dynamic_rotate %1 by %c1_i32_40 dim 1 : vector<6x16x16xf32>, i32 -> vector<6x16x16xf32>
    %cst_41 = arith.constant 0.000000e+00 : f32
    %119 = vector.shape_cast %5 : vector<1x16x16xi1> to vector<1x16x16xi1>
    %120 = vector.broadcast %119 : vector<1x16x16xi1> to vector<6x16x16xi1>
    %121 = vector.broadcast %cst_41 : f32 to vector<6x16x16xf32>
    %122 = arith.select %120, %118, %121 : vector<6x16x16xi1>, vector<6x16x16xf32>
    %123 = arith.subf %117, %122 : vector<6x16x16xf32>
    %c1_i32_42 = arith.constant 1 : i32
    %124 = tpu.dynamic_rotate %112 by %c1_i32_42 dim 1 : vector<6x16x16xf32>, i32 -> vector<6x16x16xf32>
    %cst_43 = arith.constant 0.000000e+00 : f32
    %125 = vector.shape_cast %5 : vector<1x16x16xi1> to vector<1x16x16xi1>
    %126 = vector.broadcast %125 : vector<1x16x16xi1> to vector<6x16x16xi1>
    %127 = vector.broadcast %cst_43 : f32 to vector<6x16x16xf32>
    %128 = arith.select %126, %124, %127 : vector<6x16x16xi1>, vector<6x16x16xf32>
    %cst_44 = arith.constant 2.000000e+00 : f32
    %129 = vector.broadcast %cst_44 : f32 to vector<6x16x16xf32>
    %130 = arith.mulf %129, %112 : vector<6x16x16xf32>
    %131 = arith.addf %128, %130 : vector<6x16x16xf32>
    %c15_i32_45 = arith.constant 15 : i32
    %132 = tpu.dynamic_rotate %112 by %c15_i32_45 dim 1 : vector<6x16x16xf32>, i32 -> vector<6x16x16xf32>
    %cst_46 = arith.constant 0.000000e+00 : f32
    %133 = vector.shape_cast %7 : vector<1x16x16xi1> to vector<1x16x16xi1>
    %134 = vector.broadcast %133 : vector<1x16x16xi1> to vector<6x16x16xi1>
    %135 = vector.broadcast %cst_46 : f32 to vector<6x16x16xf32>
    %136 = arith.select %134, %132, %135 : vector<6x16x16xi1>, vector<6x16x16xf32>
    %137 = arith.addf %131, %136 : vector<6x16x16xf32>
    %c1_i32_47 = arith.constant 1 : i32
    %138 = tpu.dynamic_rotate %123 by %c1_i32_47 dim 2 : vector<6x16x16xf32>, i32 -> vector<6x16x16xf32>
    %cst_48 = arith.constant 0.000000e+00 : f32
    %139 = vector.shape_cast %9 : vector<1x16x16xi1> to vector<1x16x16xi1>
    %140 = vector.broadcast %139 : vector<1x16x16xi1> to vector<6x16x16xi1>
    %141 = vector.broadcast %cst_48 : f32 to vector<6x16x16xf32>
    %142 = arith.select %140, %138, %141 : vector<6x16x16xi1>, vector<6x16x16xf32>
    %cst_49 = arith.constant 2.000000e+00 : f32
    %143 = vector.broadcast %cst_49 : f32 to vector<6x16x16xf32>
    %144 = arith.mulf %143, %123 : vector<6x16x16xf32>
    %145 = arith.addf %142, %144 : vector<6x16x16xf32>
    %c15_i32_50 = arith.constant 15 : i32
    %146 = tpu.dynamic_rotate %123 by %c15_i32_50 dim 2 : vector<6x16x16xf32>, i32 -> vector<6x16x16xf32>
    %cst_51 = arith.constant 0.000000e+00 : f32
    %147 = vector.shape_cast %11 : vector<1x16x16xi1> to vector<1x16x16xi1>
    %148 = vector.broadcast %147 : vector<1x16x16xi1> to vector<6x16x16xi1>
    %149 = vector.broadcast %cst_51 : f32 to vector<6x16x16xf32>
    %150 = arith.select %148, %146, %149 : vector<6x16x16xi1>, vector<6x16x16xf32>
    %151 = arith.addf %145, %150 : vector<6x16x16xf32>
    %152 = math.absf %137 : vector<6x16x16xf32>
    %153 = math.absf %151 : vector<6x16x16xf32>
    %154 = arith.addf %152, %153 : vector<6x16x16xf32>
    %155 = arith.subf %101, %154 : vector<6x16x16xf32>
    %156 = math.absf %155 : vector<6x16x16xf32>
    %157 = vector.shape_cast %156 : vector<6x16x16xf32> to vector<1x6x16x16xf32>
    %cst_52 = arith.constant dense<0.000000e+00> : vector<1xf32>
    %158 = vector.multi_reduction <add>, %157, %cst_52 [1, 2, 3] : vector<1x6x16x16xf32> to vector<1xf32>
    %159 = vector.shape_cast %158 : vector<1xf32> to vector<1x1x1x1xf32>
    %160 = vector.extract %159[0, 0, 0, 0] : f32 from vector<1x1x1x1xf32>
    %161 = tpu.iota {dimensions = array<i32: 1>} : vector<1x8x128xi32>
    %162 = tpu.iota {dimensions = array<i32: 2>} : vector<1x8x128xi32>
    %c0_i32_53 = arith.constant 0 : i32
    %163 = vector.broadcast %c0_i32_53 : i32 to vector<1x8x128xi32>
    %164 = arith.cmpi eq, %161, %163 : vector<1x8x128xi32>
    %c0_i32_54 = arith.constant 0 : i32
    %165 = vector.broadcast %c0_i32_54 : i32 to vector<1x8x128xi32>
    %166 = arith.cmpi eq, %162, %165 : vector<1x8x128xi32>
    %167 = arith.andi %164, %166 : vector<1x8x128xi1>
    %cst_55 = arith.constant 0.000000e+00 : f32
    %168 = vector.broadcast %17 : f32 to vector<1x8x128xf32>
    %169 = vector.broadcast %cst_55 : f32 to vector<1x8x128xf32>
    %170 = arith.select %167, %168, %169 : vector<1x8x128xi1>, vector<1x8x128xf32>
    %c0_i32_56 = arith.constant 0 : i32
    %171 = vector.broadcast %c0_i32_56 : i32 to vector<1x8x128xi32>
    %172 = arith.cmpi eq, %161, %171 : vector<1x8x128xi32>
    %c1_i32_57 = arith.constant 1 : i32
    %173 = vector.broadcast %c1_i32_57 : i32 to vector<1x8x128xi32>
    %174 = arith.cmpi eq, %162, %173 : vector<1x8x128xi32>
    %175 = arith.andi %172, %174 : vector<1x8x128xi1>
    %176 = vector.broadcast %48 : f32 to vector<1x8x128xf32>
    %177 = arith.select %175, %176, %170 : vector<1x8x128xi1>, vector<1x8x128xf32>
    %c0_i32_58 = arith.constant 0 : i32
    %178 = vector.broadcast %c0_i32_58 : i32 to vector<1x8x128xi32>
    %179 = arith.cmpi eq, %161, %178 : vector<1x8x128xi32>
    %c2_i32 = arith.constant 2 : i32
    %180 = vector.broadcast %c2_i32 : i32 to vector<1x8x128xi32>
    %181 = arith.cmpi eq, %162, %180 : vector<1x8x128xi32>
    %182 = arith.andi %179, %181 : vector<1x8x128xi1>
    %183 = vector.broadcast %160 : f32 to vector<1x8x128xf32>
    %184 = arith.select %182, %183, %177 : vector<1x8x128xi1>, vector<1x8x128xf32>
    %c0_59 = arith.constant 0 : index
    %c0_60 = arith.constant 0 : index
    %c0_61 = arith.constant 0 : index
    %185 = vector.load %arg3[%c0_59, %c0_60, %c0_61] : memref<1x8x128xf32, #tpu.memory_space<vmem>>, vector<1x8x128xf32>
    tpu.vector_store %arg3[%c0_59, %c0_60, %c0_61], %184 {strides = array<i32>} : memref<1x8x128xf32, #tpu.memory_space<vmem>>, vector<1x8x128xf32>,
    return
  }
  func.func @transform_0(%arg0: i32) -> (i32, i32, i32) {
    %c0_i32 = arith.constant 0 : i32
    %c0_i32_0 = arith.constant 0 : i32
    %c0_i32_1 = arith.constant 0 : i32
    return %arg0, %c0_i32, %c0_i32_0 : i32, i32, i32
  }
  func.func @transform_1(%arg0: i32) -> (i32, i32, i32) {
    %c0_i32 = arith.constant 0 : i32
    %c0_i32_0 = arith.constant 0 : i32
    %c0_i32_1 = arith.constant 0 : i32
    return %arg0, %c0_i32, %c0_i32_0 : i32, i32, i32
  }
  func.func @transform_2(%arg0: i32) -> (i32, i32, i32) {
    %c0_i32 = arith.constant 0 : i32
    %c0_i32_0 = arith.constant 0 : i32
    %c0_i32_1 = arith.constant 0 : i32
    return %arg0, %c0_i32, %c0_i32_0 : i32, i32, i32
  }
}

</mosaic_0001>

<llo_original>
// kernel: my_loss.1
$region0: #{my_loss.1}
  #allocation0 [shape = 'u32[]', space=smem, size = 0x4, offset = 0x4, fixed_abs, tag = 'smem constant byte address 0x4 - core index']
  #allocation1 [shape = 'u32[144,128]{1,0:T(1,128)}', space=vmem, size = 0x12000, scoped, tag = 'internal scratch']
  %s0 = inlined_call_operand.hbm [shape: f32[6,16,16], index: 0, kind: input, shape index: {}]
  %s1 = inlined_call_operand.hbm [shape: f32[6,16,16], index: 1, kind: input, shape index: {}]
  %s2 = inlined_call_operand.hbm [shape: f32[1,8,128], index: 2, kind: output, shape index: {}]
  %s3 = sld [smem:[#allocation0]]
  $region26: #{my_loss.1} parent=0
    _
  %s5 = ssub.s32 1, %s3
  %s6 = scalar_select 0, %s5, %s3
  $region1: #{my_loss.1} parent=0
    #allocation2 [shape = 'u8[49152]{0}', space=vmem, size = 0xc000, scoped, tag = 'input window, operand 0, single buffered']
    #allocation3 [shape = 's32[1]{0}', space=sflag, size = 0x4, scoped, tag = 'scoped memory for my_loss.1']
    #allocation4 [shape = 's32[1]{0}', space=sflag, size = 0x4, scoped, tag = 'scoped memory for my_loss.1']
    #allocation5 [shape = 'u8[49152]{0}', space=vmem, size = 0xc000, scoped, tag = 'input window, operand 1, single buffered']
    #allocation6 [shape = 's32[1]{0}', space=sflag, size = 0x4, scoped, tag = 'scoped memory for my_loss.1']
    #allocation7 [shape = 'u8[4096]{0}', space=vmem, size = 0x1000, scoped, tag = 'output window, operand 0, single buffered']
    %7 = vsyncpa [#allocation3], 0
    %8 = vsyncpa [#allocation6], 0
    %9 = vsyncpa [#allocation4], 0
    // Predicated region
    $region2: #{my_loss.1} parent=1 // pred_check
      _
    $region3: #{my_loss.1} parent=1 // pred_check_branch
      %11 = sbr.rel (0) target = $region5
    $region4: #{my_loss.1} parent=1 // pred_region
      %s13 = ssub.s32 1536, 1536
      %14 = vsyncadd [#allocation3], %s13
      %s15 = sshll.u32 [#allocation2], 4
      %s16 = int_to_ptr.vmem [resolvable:$true] %s15
      %21 = dma.hbm_to_vmem [thread:$0]  %s0, 1536, %s16, [#allocation3], 128, 128, 8
    $region5: #{my_loss.1} parent=1 // pred_fallthru
      _
    // Predicated region
    $region6: #{my_loss.1} parent=1 // pred_check
      _
    $region7: #{my_loss.1} parent=1 // pred_check_branch
      %23 = sbr.rel (0) target = $region9
    $region8: #{my_loss.1} parent=1 // pred_region
      %s25 = ssub.s32 1536, 1536
      %26 = vsyncadd [#allocation6], %s25
      %s27 = sshll.u32 [#allocation5], 4
      %s28 = int_to_ptr.vmem [resolvable:$true] %s27
      %33 = dma.hbm_to_vmem [thread:$0]  %s1, 1536, %s28, [#allocation6], 128, 128, 8
    $region9: #{my_loss.1} parent=1 // pred_fallthru
      _
    // Predicated region
    $region10: #{my_loss.1} parent=1 // pred_check
      _
    $region11: #{my_loss.1} parent=1 // pred_check_branch
      %35 = sbr.rel (0) target = $region13
    $region12: #{my_loss.1} parent=1 // pred_region
      %36 = dma.done [#allocation3], 1536
    $region13: #{my_loss.1} parent=1 // pred_fallthru
      _
    // Predicated region
    $region14: #{my_loss.1} parent=1 // pred_check
      _
    $region15: #{my_loss.1} parent=1 // pred_check_branch
      %38 = sbr.rel (0) target = $region17
    $region16: #{my_loss.1} parent=1 // pred_region
      %39 = dma.done [#allocation6], 1536
    $region17: #{my_loss.1} parent=1 // pred_fallthru
      _
    %v40 = vld [vmem:[#allocation2] sm:$0xff]
    %v41 = vld [vmem:[#allocation2 + $0x8] sm:$0xff]
    %v42 = vld [vmem:[#allocation2 + $0x10] sm:$0xff]
    %v43 = vld [vmem:[#allocation2 + $0x18] sm:$0xff]
    %v44 = vld [vmem:[#allocation2 + $0x20] sm:$0xff]
    %v45 = vld [vmem:[#allocation2 + $0x28] sm:$0xff]
    %v46 = vld [vmem:[#allocation2 + $0x30] sm:$0xff]
    %v47 = vld [vmem:[#allocation2 + $0x38] sm:$0xff]
    %v48 = vld [vmem:[#allocation2 + $0x40] sm:$0xff]
    %v49 = vld [vmem:[#allocation2 + $0x48] sm:$0xff]
    %v50 = vld [vmem:[#allocation2 + $0x50] sm:$0xff]
    %v51 = vld [vmem:[#allocation2 + $0x58] sm:$0xff]
    %v52 = vld [vmem:[#allocation5] sm:$0xff]
    %v53 = vld [vmem:[#allocation5 + $0x8] sm:$0xff]
    %v54 = vld [vmem:[#allocation5 + $0x10] sm:$0xff]
    %v55 = vld [vmem:[#allocation5 + $0x18] sm:$0xff]
    %v56 = vld [vmem:[#allocation5 + $0x20] sm:$0xff]
    %v57 = vld [vmem:[#allocation5 + $0x28] sm:$0xff]
    %v58 = vld [vmem:[#allocation5 + $0x30] sm:$0xff]
    %v59 = vld [vmem:[#allocation5 + $0x38] sm:$0xff]
    %v60 = vld [vmem:[#allocation5 + $0x40] sm:$0xff]
    %v61 = vld [vmem:[#allocation5 + $0x48] sm:$0xff]
    %v62 = vld [vmem:[#allocation5 + $0x50] sm:$0xff]
    %v63 = vld [vmem:[#allocation5 + $0x58] sm:$0xff]
    %v64 = vlaneseq
    %v65 = vshrl.u32 %v64, 7
    %v66 = vadd.s32 %v65, 8
    %v67 = vlaneseq
    %v68 = vand.u32 %v67, 127
    %vm69 = vcmp.gt.s32.totalorder %v65, 0
    %vm70 = vcmp.gt.s32.totalorder %v66, 0
    %vm71 = vcmp.lt.s32.totalorder %v65, 15
    %vm72 = vcmp.lt.s32.totalorder %v66, 15
    %vm73 = vcmp.gt.s32.totalorder %v68, 0
    %vm74 = vcmp.lt.s32.totalorder %v68, 15
    %v75 = vsub.f32 %v40, %v52
    %v76 = vsub.f32 %v41, %v53
    %v77 = vsub.f32 %v42, %v54
    %v78 = vsub.f32 %v43, %v55
    %v79 = vsub.f32 %v44, %v56
    %v80 = vsub.f32 %v45, %v57
    %v81 = vsub.f32 %v46, %v58
    %v82 = vsub.f32 %v47, %v59
    %v83 = vsub.f32 %v48, %v60
    %v84 = vsub.f32 %v49, %v61
    %v85 = vsub.f32 %v50, %v62
    %v86 = vsub.f32 %v51, %v63
    %v87 = vand.u32 2147483647, %v75
    %v88 = vand.u32 2147483647, %v76
    %v89 = vand.u32 2147483647, %v77
    %v90 = vand.u32 2147483647, %v78
    %v91 = vand.u32 2147483647, %v79
    %v92 = vand.u32 2147483647, %v80
    %v93 = vand.u32 2147483647, %v81
    %v94 = vand.u32 2147483647, %v82
    %v95 = vand.u32 2147483647, %v83
    %v96 = vand.u32 2147483647, %v84
    %v97 = vand.u32 2147483647, %v85
    %v98 = vand.u32 2147483647, %v86
    %vm99 = vcmask 130048
    %v100 = vsel %vm99, %v87, 0.0
    %v101 = vsel %vm99, %v88, 0.0
    %v102 = vadd.f32 %v100, %v101
    %v103 = vsel %vm99, %v89, 0.0
    %v104 = vadd.f32 %v102, %v103
    %v105 = vsel %vm99, %v90, 0.0
    %v106 = vadd.f32 %v104, %v105
    %v107 = vsel %vm99, %v91, 0.0
    %v108 = vadd.f32 %v106, %v107
    %v109 = vsel %vm99, %v92, 0.0
    %v110 = vadd.f32 %v108, %v109
    %v111 = vsel %vm99, %v93, 0.0
    %v112 = vadd.f32 %v110, %v111
    %v113 = vsel %vm99, %v94, 0.0
    %v114 = vadd.f32 %v112, %v113
    %v115 = vsel %vm99, %v95, 0.0
    %v116 = vadd.f32 %v114, %v115
    %v117 = vsel %vm99, %v96, 0.0
    %v118 = vadd.f32 %v116, %v117
    %v119 = vsel %vm99, %v97, 0.0
    %v120 = vadd.f32 %v118, %v119
    %v121 = vsel %vm99, %v98, 0.0
    %v122 = vadd.f32 %v120, %v121
    %123 = vadd.xlane.f32.xlu0 %v122
    %v124 = vpop.xlane.xlu0 %123
    %v125 = vrot.slane %v124, 4
    %v126 = vadd.f32 %v124, %v125
    %v127 = vrot.slane %v126, 2
    %v128 = vadd.f32 %v126, %v127
    %v129 = vrot.slane %v128, 1
    %v130 = vadd.f32 %v128, %v129
    %s131 = vtos %v130
    %v132 = vrot.slane %v75, 7
    %v133 = vrot.slane %v77, 7
    %v134 = vrot.slane %v79, 7
    %v135 = vrot.slane %v81, 7
    %v136 = vrot.slane %v83, 7
    %v137 = vrot.slane %v85, 7
    %v138 = vrot.slane %v76, 7
    %v139 = vrot.slane %v78, 7
    %v140 = vrot.slane %v80, 7
    %v141 = vrot.slane %v82, 7
    %v142 = vrot.slane %v84, 7
    %v143 = vrot.slane %v86, 7
    %vm144 = vcmp.lt.s32.totalorder %v65, 1
    %v145 = vsel %vm144, %v132, %v138
    %v146 = vsel %vm144, %v133, %v139
    %v147 = vsel %vm144, %v134, %v140
    %v148 = vsel %vm144, %v135, %v141
    %v149 = vsel %vm144, %v136, %v142
    %v150 = vsel %vm144, %v137, %v143
    %v151 = vsel %vm144, %v138, %v132
    %v152 = vsel %vm144, %v139, %v133
    %v153 = vsel %vm144, %v140, %v134
    %v154 = vsel %vm144, %v141, %v135
    %v155 = vsel %vm144, %v142, %v136
    %v156 = vsel %vm144, %v143, %v137
    %v157 = vsel %vm69, 1, 0
    %v158 = vsel %vm70, 1, 0
    %vm159 = vcmp.eq.s32.totalorder %v157, 1
    %vm160 = vcmp.eq.s32.totalorder %v158, 1
    %v161 = vsel %vm159, %v151, 0.0
    %v162 = vsel %vm160, %v145, 0.0
    %v163 = vsel %vm159, %v152, 0.0
    %v164 = vsel %vm160, %v146, 0.0
    %v165 = vsel %vm159, %v153, 0.0
    %v166 = vsel %vm160, %v147, 0.0
    %v167 = vsel %vm159, %v154, 0.0
    %v168 = vsel %vm160, %v148, 0.0
    %v169 = vsel %vm159, %v155, 0.0
    %v170 = vsel %vm160, %v149, 0.0
    %v171 = vsel %vm159, %v156, 0.0
    %v172 = vsel %vm160, %v150, 0.0
    %v173 = vrot.slane %v75, 1
    %v174 = vrot.slane %v77, 1
    %v175 = vrot.slane %v79, 1
    %v176 = vrot.slane %v81, 1
    %v177 = vrot.slane %v83, 1
    %v178 = vrot.slane %v85, 1
    %v179 = vrot.slane %v76, 1
    %v180 = vrot.slane %v78, 1
    %v181 = vrot.slane %v80, 1
    %v182 = vrot.slane %v82, 1
    %v183 = vrot.slane %v84, 1
    %v184 = vrot.slane %v86, 1
    %vm185 = vcmp.lt.s32.totalorder %v65, 7
    %v186 = vsel %vm185, %v173, %v179
    %v187 = vsel %vm185, %v174, %v180
    %v188 = vsel %vm185, %v175, %v181
    %v189 = vsel %vm185, %v176, %v182
    %v190 = vsel %vm185, %v177, %v183
    %v191 = vsel %vm185, %v178, %v184
    %v192 = vsel %vm185, %v179, %v173
    %v193 = vsel %vm185, %v180, %v174
    %v194 = vsel %vm185, %v181, %v175
    %v195 = vsel %vm185, %v182, %v176
    %v196 = vsel %vm185, %v183, %v177
    %v197 = vsel %vm185, %v184, %v178
    %v198 = vsel %vm71, 1, 0
    %v199 = vsel %vm72, 1, 0
    %vm200 = vcmp.eq.s32.totalorder %v198, 1
    %vm201 = vcmp.eq.s32.totalorder %v199, 1
    %v202 = vsel %vm200, %v186, 0.0
    %v203 = vsel %vm201, %v192, 0.0
    %v204 = vsel %vm200, %v187, 0.0
    %v205 = vsel %vm201, %v193, 0.0
    %v206 = vsel %vm200, %v188, 0.0
    %v207 = vsel %vm201, %v194, 0.0
    %v208 = vsel %vm200, %v189, 0.0
    %v209 = vsel %vm201, %v195, 0.0
    %v210 = vsel %vm200, %v190, 0.0
    %v211 = vsel %vm201, %v196, 0.0
    %v212 = vsel %vm200, %v191, 0.0
    %v213 = vsel %vm201, %v197, 0.0
    %v214 = vadd.f32 %v161, %v202
    %v215 = vadd.f32 %v162, %v203
    %v216 = vadd.f32 %v163, %v204
    %v217 = vadd.f32 %v164, %v205
    %v218 = vadd.f32 %v165, %v206
    %v219 = vadd.f32 %v166, %v207
    %v220 = vadd.f32 %v167, %v208
    %v221 = vadd.f32 %v168, %v209
    %v222 = vadd.f32 %v169, %v210
    %v223 = vadd.f32 %v170, %v211
    %v224 = vadd.f32 %v171, %v212
    %v225 = vadd.f32 %v172, %v213
    %vm226 = vcmask 1047680
    %227 = vrot.lane.b32.xlu0 %v75, 16
    %v228 = vpop.permute.xlu0 %227
    %v229 = vsel %vm226, %v228, %v75
    %230 = vrot.lane.b32.xlu0 %v76, 16
    %v231 = vpop.permute.xlu0 %230
    %v232 = vsel %vm226, %v231, %v76
    %233 = vrot.lane.b32.xlu0 %v77, 16
    %v234 = vpop.permute.xlu0 %233
    %v235 = vsel %vm226, %v234, %v77
    %236 = vrot.lane.b32.xlu0 %v78, 16
    %v237 = vpop.permute.xlu0 %236
    %v238 = vsel %vm226, %v237, %v78
    %239 = vrot.lane.b32.xlu0 %v79, 16
    %v240 = vpop.permute.xlu0 %239
    %v241 = vsel %vm226, %v240, %v79
    %242 = vrot.lane.b32.xlu0 %v80, 16
    %v243 = vpop.permute.xlu0 %242
    %v244 = vsel %vm226, %v243, %v80
    %245 = vrot.lane.b32.xlu0 %v81, 16
    %v246 = vpop.permute.xlu0 %245
    %v247 = vsel %vm226, %v246, %v81
    %248 = vrot.lane.b32.xlu0 %v82, 16
    %v249 = vpop.permute.xlu0 %248
    %v250 = vsel %vm226, %v249, %v82
    %251 = vrot.lane.b32.xlu0 %v83, 16
    %v252 = vpop.permute.xlu0 %251
    %v253 = vsel %vm226, %v252, %v83
    %254 = vrot.lane.b32.xlu0 %v84, 16
    %v255 = vpop.permute.xlu0 %254
    %v256 = vsel %vm226, %v255, %v84
    %257 = vrot.lane.b32.xlu0 %v85, 16
    %v258 = vpop.permute.xlu0 %257
    %v259 = vsel %vm226, %v258, %v85
    %260 = vrot.lane.b32.xlu0 %v86, 16
    %v261 = vpop.permute.xlu0 %260
    %v262 = vsel %vm226, %v261, %v86
    %263 = vrot.lane.b32.xlu0 %v229, 16
    %v264 = vpop.permute.xlu0 %263
    %265 = vrot.lane.b32.xlu0 %v232, 16
    %v266 = vpop.permute.xlu0 %265
    %267 = vrot.lane.b32.xlu0 %v235, 16
    %v268 = vpop.permute.xlu0 %267
    %269 = vrot.lane.b32.xlu0 %v238, 16
    %v270 = vpop.permute.xlu0 %269
    %271 = vrot.lane.b32.xlu0 %v241, 16
    %v272 = vpop.permute.xlu0 %271
    %273 = vrot.lane.b32.xlu0 %v244, 16
    %v274 = vpop.permute.xlu0 %273
    %275 = vrot.lane.b32.xlu0 %v247, 16
    %v276 = vpop.permute.xlu0 %275
    %277 = vrot.lane.b32.xlu0 %v250, 16
    %v278 = vpop.permute.xlu0 %277
    %279 = vrot.lane.b32.xlu0 %v253, 16
    %v280 = vpop.permute.xlu0 %279
    %281 = vrot.lane.b32.xlu0 %v256, 16
    %v282 = vpop.permute.xlu0 %281
    %283 = vrot.lane.b32.xlu0 %v259, 16
    %v284 = vpop.permute.xlu0 %283
    %285 = vrot.lane.b32.xlu0 %v262, 16
    %v286 = vpop.permute.xlu0 %285
    %v287 = vsel %vm226, %v264, %v75
    %v288 = vsel %vm226, %v266, %v76
    %v289 = vsel %vm226, %v268, %v77
    %v290 = vsel %vm226, %v270, %v78
    %v291 = vsel %vm226, %v272, %v79
    %v292 = vsel %vm226, %v274, %v80
    %v293 = vsel %vm226, %v276, %v81
    %v294 = vsel %vm226, %v278, %v82
    %v295 = vsel %vm226, %v280, %v83
    %v296 = vsel %vm226, %v282, %v84
    %v297 = vsel %vm226, %v284, %v85
    %v298 = vsel %vm226, %v286, %v86
    %v299 = vsel %vm73, 1, 0
    %vm300 = vcmp.eq.s32.totalorder %v299, 1
    %313 = vrot.lane.b32.xlu0 %v287, 113
    %v314 = vpop.permute.xlu0 %313
    %315 = vrot.lane.b32.xlu0 %v288, 113
    %v316 = vpop.permute.xlu0 %315
    %317 = vrot.lane.b32.xlu0 %v289, 113
    %v318 = vpop.permute.xlu0 %317
    %319 = vrot.lane.b32.xlu0 %v290, 113
    %v320 = vpop.permute.xlu0 %319
    %321 = vrot.lane.b32.xlu0 %v291, 113
    %v322 = vpop.permute.xlu0 %321
    %323 = vrot.lane.b32.xlu0 %v292, 113
    %v324 = vpop.permute.xlu0 %323
    %325 = vrot.lane.b32.xlu0 %v293, 113
    %v326 = vpop.permute.xlu0 %325
    %327 = vrot.lane.b32.xlu0 %v294, 113
    %v328 = vpop.permute.xlu0 %327
    %329 = vrot.lane.b32.xlu0 %v295, 113
    %v330 = vpop.permute.xlu0 %329
    %331 = vrot.lane.b32.xlu0 %v296, 113
    %v332 = vpop.permute.xlu0 %331
    %333 = vrot.lane.b32.xlu0 %v297, 113
    %v334 = vpop.permute.xlu0 %333
    %335 = vrot.lane.b32.xlu0 %v298, 113
    %v336 = vpop.permute.xlu0 %335
    %v349 = vsel %vm300, %v314, 0.0
    %v350 = vsel %vm300, %v316, 0.0
    %v351 = vsel %vm300, %v318, 0.0
    %v352 = vsel %vm300, %v320, 0.0
    %v353 = vsel %vm300, %v322, 0.0
    %v354 = vsel %vm300, %v324, 0.0
    %v355 = vsel %vm300, %v326, 0.0
    %v356 = vsel %vm300, %v328, 0.0
    %v357 = vsel %vm300, %v330, 0.0
    %v358 = vsel %vm300, %v332, 0.0
    %v359 = vsel %vm300, %v334, 0.0
    %v360 = vsel %vm300, %v336, 0.0
    %v361 = vadd.f32 %v214, %v349
    %v362 = vadd.f32 %v215, %v350
    %v363 = vadd.f32 %v216, %v351
    %v364 = vadd.f32 %v217, %v352
    %v365 = vadd.f32 %v218, %v353
    %v366 = vadd.f32 %v219, %v354
    %v367 = vadd.f32 %v220, %v355
    %v368 = vadd.f32 %v221, %v356
    %v369 = vadd.f32 %v222, %v357
    %v370 = vadd.f32 %v223, %v358
    %v371 = vadd.f32 %v224, %v359
    %v372 = vadd.f32 %v225, %v360
    %v373 = vsel %vm74, 1, 0
    %vm374 = vcmp.eq.s32.totalorder %v373, 1
    %375 = vrot.lane.b32.xlu0 %v287, 127
    %v376 = vpop.permute.xlu0 %375
    %377 = vrot.lane.b32.xlu0 %v288, 127
    %v378 = vpop.permute.xlu0 %377
    %379 = vrot.lane.b32.xlu0 %v289, 127
    %v380 = vpop.permute.xlu0 %379
    %381 = vrot.lane.b32.xlu0 %v290, 127
    %v382 = vpop.permute.xlu0 %381
    %383 = vrot.lane.b32.xlu0 %v291, 127
    %v384 = vpop.permute.xlu0 %383
    %385 = vrot.lane.b32.xlu0 %v292, 127
    %v386 = vpop.permute.xlu0 %385
    %387 = vrot.lane.b32.xlu0 %v293, 127
    %v388 = vpop.permute.xlu0 %387
    %389 = vrot.lane.b32.xlu0 %v294, 127
    %v390 = vpop.permute.xlu0 %389
    %391 = vrot.lane.b32.xlu0 %v295, 127
    %v392 = vpop.permute.xlu0 %391
    %393 = vrot.lane.b32.xlu0 %v296, 127
    %v394 = vpop.permute.xlu0 %393
    %395 = vrot.lane.b32.xlu0 %v297, 127
    %v396 = vpop.permute.xlu0 %395
    %397 = vrot.lane.b32.xlu0 %v298, 127
    %v398 = vpop.permute.xlu0 %397
    %v411 = vsel %vm374, %v376, 0.0
    %v412 = vsel %vm374, %v378, 0.0
    %v413 = vsel %vm374, %v380, 0.0
    %v414 = vsel %vm374, %v382, 0.0
    %v415 = vsel %vm374, %v384, 0.0
    %v416 = vsel %vm374, %v386, 0.0
    %v417 = vsel %vm374, %v388, 0.0
    %v418 = vsel %vm374, %v390, 0.0
    %v419 = vsel %vm374, %v392, 0.0
    %v420 = vsel %vm374, %v394, 0.0
    %v421 = vsel %vm374, %v396, 0.0
    %v422 = vsel %vm374, %v398, 0.0
    %v423 = vadd.f32 %v361, %v411
    %v424 = vadd.f32 %v362, %v412
    %v425 = vadd.f32 %v363, %v413
    %v426 = vadd.f32 %v364, %v414
    %v427 = vadd.f32 %v365, %v415
    %v428 = vadd.f32 %v366, %v416
    %v429 = vadd.f32 %v367, %v417
    %v430 = vadd.f32 %v368, %v418
    %v431 = vadd.f32 %v369, %v419
    %v432 = vadd.f32 %v370, %v420
    %v433 = vadd.f32 %v371, %v421
    %v434 = vadd.f32 %v372, %v422
    %v435 = vmul.f32 %v75, 4.0
    %v436 = vmul.f32 %v76, 4.0
    %v437 = vmul.f32 %v77, 4.0
    %v438 = vmul.f32 %v78, 4.0
    %v439 = vmul.f32 %v79, 4.0
    %v440 = vmul.f32 %v80, 4.0
    %v441 = vmul.f32 %v81, 4.0
    %v442 = vmul.f32 %v82, 4.0
    %v443 = vmul.f32 %v83, 4.0
    %v444 = vmul.f32 %v84, 4.0
    %v445 = vmul.f32 %v85, 4.0
    %v446 = vmul.f32 %v86, 4.0
    %v447 = vsub.f32 %v423, %v435
    %v448 = vsub.f32 %v424, %v436
    %v449 = vsub.f32 %v425, %v437
    %v450 = vsub.f32 %v426, %v438
    %v451 = vsub.f32 %v427, %v439
    %v452 = vsub.f32 %v428, %v440
    %v453 = vsub.f32 %v429, %v441
    %v454 = vsub.f32 %v430, %v442
    %v455 = vsub.f32 %v431, %v443
    %v456 = vsub.f32 %v432, %v444
    %v457 = vsub.f32 %v433, %v445
    %v458 = vsub.f32 %v434, %v446
    %v459 = vand.u32 2147483647, %v447
    %v460 = vand.u32 2147483647, %v448
    %v461 = vand.u32 2147483647, %v449
    %v462 = vand.u32 2147483647, %v450
    %v463 = vand.u32 2147483647, %v451
    %v464 = vand.u32 2147483647, %v452
    %v465 = vand.u32 2147483647, %v453
    %v466 = vand.u32 2147483647, %v454
    %v467 = vand.u32 2147483647, %v455
    %v468 = vand.u32 2147483647, %v456
    %v469 = vand.u32 2147483647, %v457
    %v470 = vand.u32 2147483647, %v458
    %v471 = vsel %vm99, %v459, 0.0
    %v472 = vsel %vm99, %v460, 0.0
    %v473 = vadd.f32 %v471, %v472
    %v474 = vsel %vm99, %v461, 0.0
    %v475 = vadd.f32 %v473, %v474
    %v476 = vsel %vm99, %v462, 0.0
    %v477 = vadd.f32 %v475, %v476
    %v478 = vsel %vm99, %v463, 0.0
    %v479 = vadd.f32 %v477, %v478
    %v480 = vsel %vm99, %v464, 0.0
    %v481 = vadd.f32 %v479, %v480
    %v482 = vsel %vm99, %v465, 0.0
    %v483 = vadd.f32 %v481, %v482
    %v484 = vsel %vm99, %v466, 0.0
    %v485 = vadd.f32 %v483, %v484
    %v486 = vsel %vm99, %v467, 0.0
    %v487 = vadd.f32 %v485, %v486
    %v488 = vsel %vm99, %v468, 0.0
    %v489 = vadd.f32 %v487, %v488
    %v490 = vsel %vm99, %v469, 0.0
    %v491 = vadd.f32 %v489, %v490
    %v492 = vsel %vm99, %v470, 0.0
    %v493 = vadd.f32 %v491, %v492
    %494 = vadd.xlane.f32.xlu0 %v493
    %v495 = vpop.xlane.xlu0 %494
    %v496 = vrot.slane %v495, 4
    %v497 = vadd.f32 %v495, %v496
    %v498 = vrot.slane %v497, 2
    %v499 = vadd.f32 %v497, %v498
    %v500 = vrot.slane %v499, 1
    %v501 = vadd.f32 %v499, %v500
    %s502 = vtos %v501
    %503 = vrot.lane.b32.xlu0 %v40, 16
    %v504 = vpop.permute.xlu0 %503
    %v505 = vsel %vm226, %v504, %v40
    %506 = vrot.lane.b32.xlu0 %v41, 16
    %v507 = vpop.permute.xlu0 %506
    %v508 = vsel %vm226, %v507, %v41
    %509 = vrot.lane.b32.xlu0 %v42, 16
    %v510 = vpop.permute.xlu0 %509
    %v511 = vsel %vm226, %v510, %v42
    %512 = vrot.lane.b32.xlu0 %v43, 16
    %v513 = vpop.permute.xlu0 %512
    %v514 = vsel %vm226, %v513, %v43
    %515 = vrot.lane.b32.xlu0 %v44, 16
    %v516 = vpop.permute.xlu0 %515
    %v517 = vsel %vm226, %v516, %v44
    %518 = vrot.lane.b32.xlu0 %v45, 16
    %v519 = vpop.permute.xlu0 %518
    %v520 = vsel %vm226, %v519, %v45
    %521 = vrot.lane.b32.xlu0 %v46, 16
    %v522 = vpop.permute.xlu0 %521
    %v523 = vsel %vm226, %v522, %v46
    %524 = vrot.lane.b32.xlu0 %v47, 16
    %v525 = vpop.permute.xlu0 %524
    %v526 = vsel %vm226, %v525, %v47
    %527 = vrot.lane.b32.xlu0 %v48, 16
    %v528 = vpop.permute.xlu0 %527
    %v529 = vsel %vm226, %v528, %v48
    %530 = vrot.lane.b32.xlu0 %v49, 16
    %v531 = vpop.permute.xlu0 %530
    %v532 = vsel %vm226, %v531, %v49
    %533 = vrot.lane.b32.xlu0 %v50, 16
    %v534 = vpop.permute.xlu0 %533
    %v535 = vsel %vm226, %v534, %v50
    %536 = vrot.lane.b32.xlu0 %v51, 16
    %v537 = vpop.permute.xlu0 %536
    %v538 = vsel %vm226, %v537, %v51
    %539 = vrot.lane.b32.xlu0 %v505, 16
    %v540 = vpop.permute.xlu0 %539
    %541 = vrot.lane.b32.xlu0 %v508, 16
    %v542 = vpop.permute.xlu0 %541
    %543 = vrot.lane.b32.xlu0 %v511, 16
    %v544 = vpop.permute.xlu0 %543
    %545 = vrot.lane.b32.xlu0 %v514, 16
    %v546 = vpop.permute.xlu0 %545
    %547 = vrot.lane.b32.xlu0 %v517, 16
    %v548 = vpop.permute.xlu0 %547
    %549 = vrot.lane.b32.xlu0 %v520, 16
    %v550 = vpop.permute.xlu0 %549
    %551 = vrot.lane.b32.xlu0 %v523, 16
    %v552 = vpop.permute.xlu0 %551
    %553 = vrot.lane.b32.xlu0 %v526, 16
    %v554 = vpop.permute.xlu0 %553
    %555 = vrot.lane.b32.xlu0 %v529, 16
    %v556 = vpop.permute.xlu0 %555
    %557 = vrot.lane.b32.xlu0 %v532, 16
    %v558 = vpop.permute.xlu0 %557
    %559 = vrot.lane.b32.xlu0 %v535, 16
    %v560 = vpop.permute.xlu0 %559
    %561 = vrot.lane.b32.xlu0 %v538, 16
    %v562 = vpop.permute.xlu0 %561
    %v563 = vsel %vm226, %v540, %v40
    %v564 = vsel %vm226, %v542, %v41
    %v565 = vsel %vm226, %v544, %v42
    %v566 = vsel %vm226, %v546, %v43
    %v567 = vsel %vm226, %v548, %v44
    %v568 = vsel %vm226, %v550, %v45
    %v569 = vsel %vm226, %v552, %v46
    %v570 = vsel %vm226, %v554, %v47
    %v571 = vsel %vm226, %v556, %v48
    %v572 = vsel %vm226, %v558, %v49
    %v573 = vsel %vm226, %v560, %v50
    %v574 = vsel %vm226, %v562, %v51
    %587 = vrot.lane.b32.xlu0 %v563, 127
    %v588 = vpop.permute.xlu0 %587
    %589 = vrot.lane.b32.xlu0 %v564, 127
    %v590 = vpop.permute.xlu0 %589
    %591 = vrot.lane.b32.xlu0 %v565, 127
    %v592 = vpop.permute.xlu0 %591
    %593 = vrot.lane.b32.xlu0 %v566, 127
    %v594 = vpop.permute.xlu0 %593
    %595 = vrot.lane.b32.xlu0 %v567, 127
    %v596 = vpop.permute.xlu0 %595
    %597 = vrot.lane.b32.xlu0 %v568, 127
    %v598 = vpop.permute.xlu0 %597
    %599 = vrot.lane.b32.xlu0 %v569, 127
    %v600 = vpop.permute.xlu0 %599
    %601 = vrot.lane.b32.xlu0 %v570, 127
    %v602 = vpop.permute.xlu0 %601
    %603 = vrot.lane.b32.xlu0 %v571, 127
    %v604 = vpop.permute.xlu0 %603
    %605 = vrot.lane.b32.xlu0 %v572, 127
    %v606 = vpop.permute.xlu0 %605
    %607 = vrot.lane.b32.xlu0 %v573, 127
    %v608 = vpop.permute.xlu0 %607
    %609 = vrot.lane.b32.xlu0 %v574, 127
    %v610 = vpop.permute.xlu0 %609
    %v623 = vsel %vm374, %v588, 0.0
    %v624 = vsel %vm374, %v590, 0.0
    %v625 = vsel %vm374, %v592, 0.0
    %v626 = vsel %vm374, %v594, 0.0
    %v627 = vsel %vm374, %v596, 0.0
    %v628 = vsel %vm374, %v598, 0.0
    %v629 = vsel %vm374, %v600, 0.0
    %v630 = vsel %vm374, %v602, 0.0
    %v631 = vsel %vm374, %v604, 0.0
    %v632 = vsel %vm374, %v606, 0.0
    %v633 = vsel %vm374, %v608, 0.0
    %v634 = vsel %vm374, %v610, 0.0
    %635 = vrot.lane.b32.xlu0 %v563, 113
    %v636 = vpop.permute.xlu0 %635
    %637 = vrot.lane.b32.xlu0 %v564, 113
    %v638 = vpop.permute.xlu0 %637
    %639 = vrot.lane.b32.xlu0 %v565, 113
    %v640 = vpop.permute.xlu0 %639
    %641 = vrot.lane.b32.xlu0 %v566, 113
    %v642 = vpop.permute.xlu0 %641
    %643 = vrot.lane.b32.xlu0 %v567, 113
    %v644 = vpop.permute.xlu0 %643
    %645 = vrot.lane.b32.xlu0 %v568, 113
    %v646 = vpop.permute.xlu0 %645
    %647 = vrot.lane.b32.xlu0 %v569, 113
    %v648 = vpop.permute.xlu0 %647
    %649 = vrot.lane.b32.xlu0 %v570, 113
    %v650 = vpop.permute.xlu0 %649
    %651 = vrot.lane.b32.xlu0 %v571, 113
    %v652 = vpop.permute.xlu0 %651
    %653 = vrot.lane.b32.xlu0 %v572, 113
    %v654 = vpop.permute.xlu0 %653
    %655 = vrot.lane.b32.xlu0 %v573, 113
    %v656 = vpop.permute.xlu0 %655
    %657 = vrot.lane.b32.xlu0 %v574, 113
    %v658 = vpop.permute.xlu0 %657
    %v671 = vsel %vm300, %v636, 0.0
    %v672 = vsel %vm300, %v638, 0.0
    %v673 = vsel %vm300, %v640, 0.0
    %v674 = vsel %vm300, %v642, 0.0
    %v675 = vsel %vm300, %v644, 0.0
    %v676 = vsel %vm300, %v646, 0.0
    %v677 = vsel %vm300, %v648, 0.0
    %v678 = vsel %vm300, %v650, 0.0
    %v679 = vsel %vm300, %v652, 0.0
    %v680 = vsel %vm300, %v654, 0.0
    %v681 = vsel %vm300, %v656, 0.0
    %v682 = vsel %vm300, %v658, 0.0
    %v683 = vsub.f32 %v623, %v671
    %v684 = vsub.f32 %v624, %v672
    %v685 = vsub.f32 %v625, %v673
    %v686 = vsub.f32 %v626, %v674
    %v687 = vsub.f32 %v627, %v675
    %v688 = vsub.f32 %v628, %v676
    %v689 = vsub.f32 %v629, %v677
    %v690 = vsub.f32 %v630, %v678
    %v691 = vsub.f32 %v631, %v679
    %v692 = vsub.f32 %v632, %v680
    %v693 = vsub.f32 %v633, %v681
    %v694 = vsub.f32 %v634, %v682
    %v695 = vrot.slane %v40, 1
    %v696 = vrot.slane %v42, 1
    %v697 = vrot.slane %v44, 1
    %v698 = vrot.slane %v46, 1
    %v699 = vrot.slane %v48, 1
    %v700 = vrot.slane %v50, 1
    %v701 = vrot.slane %v41, 1
    %v702 = vrot.slane %v43, 1
    %v703 = vrot.slane %v45, 1
    %v704 = vrot.slane %v47, 1
    %v705 = vrot.slane %v49, 1
    %v706 = vrot.slane %v51, 1
    %v707 = vsel %vm185, %v695, %v701
    %v708 = vsel %vm185, %v696, %v702
    %v709 = vsel %vm185, %v697, %v703
    %v710 = vsel %vm185, %v698, %v704
    %v711 = vsel %vm185, %v699, %v705
    %v712 = vsel %vm185, %v700, %v706
    %v713 = vsel %vm185, %v701, %v695
    %v714 = vsel %vm185, %v702, %v696
    %v715 = vsel %vm185, %v703, %v697
    %v716 = vsel %vm185, %v704, %v698
    %v717 = vsel %vm185, %v705, %v699
    %v718 = vsel %vm185, %v706, %v700
    %v719 = vsel %vm200, %v707, 0.0
    %v720 = vsel %vm201, %v713, 0.0
    %v721 = vsel %vm200, %v708, 0.0
    %v722 = vsel %vm201, %v714, 0.0
    %v723 = vsel %vm200, %v709, 0.0
    %v724 = vsel %vm201, %v715, 0.0
    %v725 = vsel %vm200, %v710, 0.0
    %v726 = vsel %vm201, %v716, 0.0
    %v727 = vsel %vm200, %v711, 0.0
    %v728 = vsel %vm201, %v717, 0.0
    %v729 = vsel %vm200, %v712, 0.0
    %v730 = vsel %vm201, %v718, 0.0
    %v731 = vrot.slane %v40, 7
    %v732 = vrot.slane %v42, 7
    %v733 = vrot.slane %v44, 7
    %v734 = vrot.slane %v46, 7
    %v735 = vrot.slane %v48, 7
    %v736 = vrot.slane %v50, 7
    %v737 = vrot.slane %v41, 7
    %v738 = vrot.slane %v43, 7
    %v739 = vrot.slane %v45, 7
    %v740 = vrot.slane %v47, 7
    %v741 = vrot.slane %v49, 7
    %v742 = vrot.slane %v51, 7
    %v743 = vsel %vm144, %v731, %v737
    %v744 = vsel %vm144, %v732, %v738
    %v745 = vsel %vm144, %v733, %v739
    %v746 = vsel %vm144, %v734, %v740
    %v747 = vsel %vm144, %v735, %v741
    %v748 = vsel %vm144, %v736, %v742
    %v749 = vsel %vm144, %v737, %v731
    %v750 = vsel %vm144, %v738, %v732
    %v751 = vsel %vm144, %v739, %v733
    %v752 = vsel %vm144, %v740, %v734
    %v753 = vsel %vm144, %v741, %v735
    %v754 = vsel %vm144, %v742, %v736
    %v755 = vsel %vm159, %v749, 0.0
    %v756 = vsel %vm160, %v743, 0.0
    %v757 = vsel %vm159, %v750, 0.0
    %v758 = vsel %vm160, %v744, 0.0
    %v759 = vsel %vm159, %v751, 0.0
    %v760 = vsel %vm160, %v745, 0.0
    %v761 = vsel %vm159, %v752, 0.0
    %v762 = vsel %vm160, %v746, 0.0
    %v763 = vsel %vm159, %v753, 0.0
    %v764 = vsel %vm160, %v747, 0.0
    %v765 = vsel %vm159, %v754, 0.0
    %v766 = vsel %vm160, %v748, 0.0
    %v767 = vsub.f32 %v719, %v755
    %v768 = vsub.f32 %v720, %v756
    %v769 = vsub.f32 %v721, %v757
    %v770 = vsub.f32 %v722, %v758
    %v771 = vsub.f32 %v723, %v759
    %v772 = vsub.f32 %v724, %v760
    %v773 = vsub.f32 %v725, %v761
    %v774 = vsub.f32 %v726, %v762
    %v775 = vsub.f32 %v727, %v763
    %v776 = vsub.f32 %v728, %v764
    %v777 = vsub.f32 %v729, %v765
    %v778 = vsub.f32 %v730, %v766
    %v779 = vrot.slane %v683, 7
    %v780 = vrot.slane %v685, 7
    %v781 = vrot.slane %v687, 7
    %v782 = vrot.slane %v689, 7
    %v783 = vrot.slane %v691, 7
    %v784 = vrot.slane %v693, 7
    %v785 = vrot.slane %v684, 7
    %v786 = vrot.slane %v686, 7
    %v787 = vrot.slane %v688, 7
    %v788 = vrot.slane %v690, 7
    %v789 = vrot.slane %v692, 7
    %v790 = vrot.slane %v694, 7
    %v791 = vsel %vm144, %v779, %v785
    %v792 = vsel %vm144, %v780, %v786
    %v793 = vsel %vm144, %v781, %v787
    %v794 = vsel %vm144, %v782, %v788
    %v795 = vsel %vm144, %v783, %v789
    %v796 = vsel %vm144, %v784, %v790
    %v797 = vsel %vm144, %v785, %v779
    %v798 = vsel %vm144, %v786, %v780
    %v799 = vsel %vm144, %v787, %v781
    %v800 = vsel %vm144, %v788, %v782
    %v801 = vsel %vm144, %v789, %v783
    %v802 = vsel %vm144, %v790, %v784
    %v803 = vsel %vm159, %v797, 0.0
    %v804 = vsel %vm160, %v791, 0.0
    %v805 = vsel %vm159, %v798, 0.0
    %v806 = vsel %vm160, %v792, 0.0
    %v807 = vsel %vm159, %v799, 0.0
    %v808 = vsel %vm160, %v793, 0.0
    %v809 = vsel %vm159, %v800, 0.0
    %v810 = vsel %vm160, %v794, 0.0
    %v811 = vsel %vm159, %v801, 0.0
    %v812 = vsel %vm160, %v795, 0.0
    %v813 = vsel %vm159, %v802, 0.0
    %v814 = vsel %vm160, %v796, 0.0
    %v815 = vmul.f32 %v683, 2.0
    %v816 = vmul.f32 %v684, 2.0
    %v817 = vmul.f32 %v685, 2.0
    %v818 = vmul.f32 %v686, 2.0
    %v819 = vmul.f32 %v687, 2.0
    %v820 = vmul.f32 %v688, 2.0
    %v821 = vmul.f32 %v689, 2.0
    %v822 = vmul.f32 %v690, 2.0
    %v823 = vmul.f32 %v691, 2.0
    %v824 = vmul.f32 %v692, 2.0
    %v825 = vmul.f32 %v693, 2.0
    %v826 = vmul.f32 %v694, 2.0
    %v827 = vadd.f32 %v803, %v815
    %v828 = vadd.f32 %v804, %v816
    %v829 = vadd.f32 %v805, %v817
    %v830 = vadd.f32 %v806, %v818
    %v831 = vadd.f32 %v807, %v819
    %v832 = vadd.f32 %v808, %v820
    %v833 = vadd.f32 %v809, %v821
    %v834 = vadd.f32 %v810, %v822
    %v835 = vadd.f32 %v811, %v823
    %v836 = vadd.f32 %v812, %v824
    %v837 = vadd.f32 %v813, %v825
    %v838 = vadd.f32 %v814, %v826
    %v839 = vrot.slane %v683, 1
    %v840 = vrot.slane %v685, 1
    %v841 = vrot.slane %v687, 1
    %v842 = vrot.slane %v689, 1
    %v843 = vrot.slane %v691, 1
    %v844 = vrot.slane %v693, 1
    %v845 = vrot.slane %v684, 1
    %v846 = vrot.slane %v686, 1
    %v847 = vrot.slane %v688, 1
    %v848 = vrot.slane %v690, 1
    %v849 = vrot.slane %v692, 1
    %v850 = vrot.slane %v694, 1
    %v851 = vsel %vm185, %v839, %v845
    %v852 = vsel %vm185, %v840, %v846
    %v853 = vsel %vm185, %v841, %v847
    %v854 = vsel %vm185, %v842, %v848
    %v855 = vsel %vm185, %v843, %v849
    %v856 = vsel %vm185, %v844, %v850
    %v857 = vsel %vm185, %v845, %v839
    %v858 = vsel %vm185, %v846, %v840
    %v859 = vsel %vm185, %v847, %v841
    %v860 = vsel %vm185, %v848, %v842
    %v861 = vsel %vm185, %v849, %v843
    %v862 = vsel %vm185, %v850, %v844
    %v863 = vsel %vm200, %v851, 0.0
    %v864 = vsel %vm201, %v857, 0.0
    %v865 = vsel %vm200, %v852, 0.0
    %v866 = vsel %vm201, %v858, 0.0
    %v867 = vsel %vm200, %v853, 0.0
    %v868 = vsel %vm201, %v859, 0.0
    %v869 = vsel %vm200, %v854, 0.0
    %v870 = vsel %vm201, %v860, 0.0
    %v871 = vsel %vm200, %v855, 0.0
    %v872 = vsel %vm201, %v861, 0.0
    %v873 = vsel %vm200, %v856, 0.0
    %v874 = vsel %vm201, %v862, 0.0
    %v875 = vadd.f32 %v827, %v863
    %v876 = vadd.f32 %v828, %v864
    %v877 = vadd.f32 %v829, %v865
    %v878 = vadd.f32 %v830, %v866
    %v879 = vadd.f32 %v831, %v867
    %v880 = vadd.f32 %v832, %v868
    %v881 = vadd.f32 %v833, %v869
    %v882 = vadd.f32 %v834, %v870
    %v883 = vadd.f32 %v835, %v871
    %v884 = vadd.f32 %v836, %v872
    %v885 = vadd.f32 %v837, %v873
    %v886 = vadd.f32 %v838, %v874
    %887 = vrot.lane.b32.xlu0 %v767, 16
    %v888 = vpop.permute.xlu0 %887
    %v889 = vsel %vm226, %v888, %v767
    %890 = vrot.lane.b32.xlu0 %v768, 16
    %v891 = vpop.permute.xlu0 %890
    %v892 = vsel %vm226, %v891, %v768
    %893 = vrot.lane.b32.xlu0 %v769, 16
    %v894 = vpop.permute.xlu0 %893
    %v895 = vsel %vm226, %v894, %v769
    %896 = vrot.lane.b32.xlu0 %v770, 16
    %v897 = vpop.permute.xlu0 %896
    %v898 = vsel %vm226, %v897, %v770
    %899 = vrot.lane.b32.xlu0 %v771, 16
    %v900 = vpop.permute.xlu0 %899
    %v901 = vsel %vm226, %v900, %v771
    %902 = vrot.lane.b32.xlu0 %v772, 16
    %v903 = vpop.permute.xlu0 %902
    %v904 = vsel %vm226, %v903, %v772
    %905 = vrot.lane.b32.xlu0 %v773, 16
    %v906 = vpop.permute.xlu0 %905
    %v907 = vsel %vm226, %v906, %v773
    %908 = vrot.lane.b32.xlu0 %v774, 16
    %v909 = vpop.permute.xlu0 %908
    %v910 = vsel %vm226, %v909, %v774
    %911 = vrot.lane.b32.xlu0 %v775, 16
    %v912 = vpop.permute.xlu0 %911
    %v913 = vsel %vm226, %v912, %v775
    %914 = vrot.lane.b32.xlu0 %v776, 16
    %v915 = vpop.permute.xlu0 %914
    %v916 = vsel %vm226, %v915, %v776
    %917 = vrot.lane.b32.xlu0 %v777, 16
    %v918 = vpop.permute.xlu0 %917
    %v919 = vsel %vm226, %v918, %v777
    %920 = vrot.lane.b32.xlu0 %v778, 16
    %v921 = vpop.permute.xlu0 %920
    %v922 = vsel %vm226, %v921, %v778
    %923 = vrot.lane.b32.xlu0 %v889, 16
    %v924 = vpop.permute.xlu0 %923
    %925 = vrot.lane.b32.xlu0 %v892, 16
    %v926 = vpop.permute.xlu0 %925
    %927 = vrot.lane.b32.xlu0 %v895, 16
    %v928 = vpop.permute.xlu0 %927
    %929 = vrot.lane.b32.xlu0 %v898, 16
    %v930 = vpop.permute.xlu0 %929
    %931 = vrot.lane.b32.xlu0 %v901, 16
    %v932 = vpop.permute.xlu0 %931
    %933 = vrot.lane.b32.xlu0 %v904, 16
    %v934 = vpop.permute.xlu0 %933
    %935 = vrot.lane.b32.xlu0 %v907, 16
    %v936 = vpop.permute.xlu0 %935
    %937 = vrot.lane.b32.xlu0 %v910, 16
    %v938 = vpop.permute.xlu0 %937
    %939 = vrot.lane.b32.xlu0 %v913, 16
    %v940 = vpop.permute.xlu0 %939
    %941 = vrot.lane.b32.xlu0 %v916, 16
    %v942 = vpop.permute.xlu0 %941
    %943 = vrot.lane.b32.xlu0 %v919, 16
    %v944 = vpop.permute.xlu0 %943
    %945 = vrot.lane.b32.xlu0 %v922, 16
    %v946 = vpop.permute.xlu0 %945
    %v947 = vsel %vm226, %v924, %v767
    %v948 = vsel %vm226, %v926, %v768
    %v949 = vsel %vm226, %v928, %v769
    %v950 = vsel %vm226, %v930, %v770
    %v951 = vsel %vm226, %v932, %v771
    %v952 = vsel %vm226, %v934, %v772
    %v953 = vsel %vm226, %v936, %v773
    %v954 = vsel %vm226, %v938, %v774
    %v955 = vsel %vm226, %v940, %v775
    %v956 = vsel %vm226, %v942, %v776
    %v957 = vsel %vm226, %v944, %v777
    %v958 = vsel %vm226, %v946, %v778
    %971 = vrot.lane.b32.xlu0 %v947, 113
    %v972 = vpop.permute.xlu0 %971
    %973 = vrot.lane.b32.xlu0 %v948, 113
    %v974 = vpop.permute.xlu0 %973
    %975 = vrot.lane.b32.xlu0 %v949, 113
    %v976 = vpop.permute.xlu0 %975
    %977 = vrot.lane.b32.xlu0 %v950, 113
    %v978 = vpop.permute.xlu0 %977
    %979 = vrot.lane.b32.xlu0 %v951, 113
    %v980 = vpop.permute.xlu0 %979
    %981 = vrot.lane.b32.xlu0 %v952, 113
    %v982 = vpop.permute.xlu0 %981
    %983 = vrot.lane.b32.xlu0 %v953, 113
    %v984 = vpop.permute.xlu0 %983
    %985 = vrot.lane.b32.xlu0 %v954, 113
    %v986 = vpop.permute.xlu0 %985
    %987 = vrot.lane.b32.xlu0 %v955, 113
    %v988 = vpop.permute.xlu0 %987
    %989 = vrot.lane.b32.xlu0 %v956, 113
    %v990 = vpop.permute.xlu0 %989
    %991 = vrot.lane.b32.xlu0 %v957, 113
    %v992 = vpop.permute.xlu0 %991
    %993 = vrot.lane.b32.xlu0 %v958, 113
    %v994 = vpop.permute.xlu0 %993
    %v1007 = vsel %vm300, %v972, 0.0
    %v1008 = vsel %vm300, %v974, 0.0
    %v1009 = vsel %vm300, %v976, 0.0
    %v1010 = vsel %vm300, %v978, 0.0
    %v1011 = vsel %vm300, %v980, 0.0
    %v1012 = vsel %vm300, %v982, 0.0
    %v1013 = vsel %vm300, %v984, 0.0
    %v1014 = vsel %vm300, %v986, 0.0
    %v1015 = vsel %vm300, %v988, 0.0
    %v1016 = vsel %vm300, %v990, 0.0
    %v1017 = vsel %vm300, %v992, 0.0
    %v1018 = vsel %vm300, %v994, 0.0
    %v1019 = vmul.f32 %v767, 2.0
    %v1020 = vmul.f32 %v768, 2.0
    %v1021 = vmul.f32 %v769, 2.0
    %v1022 = vmul.f32 %v770, 2.0
    %v1023 = vmul.f32 %v771, 2.0
    %v1024 = vmul.f32 %v772, 2.0
    %v1025 = vmul.f32 %v773, 2.0
    %v1026 = vmul.f32 %v774, 2.0
    %v1027 = vmul.f32 %v775, 2.0
    %v1028 = vmul.f32 %v776, 2.0
    %v1029 = vmul.f32 %v777, 2.0
    %v1030 = vmul.f32 %v778, 2.0
    %v1031 = vadd.f32 %v1007, %v1019
    %v1032 = vadd.f32 %v1008, %v1020
    %v1033 = vadd.f32 %v1009, %v1021
    %v1034 = vadd.f32 %v1010, %v1022
    %v1035 = vadd.f32 %v1011, %v1023
    %v1036 = vadd.f32 %v1012, %v1024
    %v1037 = vadd.f32 %v1013, %v1025
    %v1038 = vadd.f32 %v1014, %v1026
    %v1039 = vadd.f32 %v1015, %v1027
    %v1040 = vadd.f32 %v1016, %v1028
    %v1041 = vadd.f32 %v1017, %v1029
    %v1042 = vadd.f32 %v1018, %v1030
    %1043 = vrot.lane.b32.xlu0 %v947, 127
    %v1044 = vpop.permute.xlu0 %1043
    %1045 = vrot.lane.b32.xlu0 %v948, 127
    %v1046 = vpop.permute.xlu0 %1045
    %1047 = vrot.lane.b32.xlu0 %v949, 127
    %v1048 = vpop.permute.xlu0 %1047
    %1049 = vrot.lane.b32.xlu0 %v950, 127
    %v1050 = vpop.permute.xlu0 %1049
    %1051 = vrot.lane.b32.xlu0 %v951, 127
    %v1052 = vpop.permute.xlu0 %1051
    %1053 = vrot.lane.b32.xlu0 %v952, 127
    %v1054 = vpop.permute.xlu0 %1053
    %1055 = vrot.lane.b32.xlu0 %v953, 127
    %v1056 = vpop.permute.xlu0 %1055
    %1057 = vrot.lane.b32.xlu0 %v954, 127
    %v1058 = vpop.permute.xlu0 %1057
    %1059 = vrot.lane.b32.xlu0 %v955, 127
    %v1060 = vpop.permute.xlu0 %1059
    %1061 = vrot.lane.b32.xlu0 %v956, 127
    %v1062 = vpop.permute.xlu0 %1061
    %1063 = vrot.lane.b32.xlu0 %v957, 127
    %v1064 = vpop.permute.xlu0 %1063
    %1065 = vrot.lane.b32.xlu0 %v958, 127
    %v1066 = vpop.permute.xlu0 %1065
    %v1079 = vsel %vm374, %v1044, 0.0
    %v1080 = vsel %vm374, %v1046, 0.0
    %v1081 = vsel %vm374, %v1048, 0.0
    %v1082 = vsel %vm374, %v1050, 0.0
    %v1083 = vsel %vm374, %v1052, 0.0
    %v1084 = vsel %vm374, %v1054, 0.0
    %v1085 = vsel %vm374, %v1056, 0.0
    %v1086 = vsel %vm374, %v1058, 0.0
    %v1087 = vsel %vm374, %v1060, 0.0
    %v1088 = vsel %vm374, %v1062, 0.0
    %v1089 = vsel %vm374, %v1064, 0.0
    %v1090 = vsel %vm374, %v1066, 0.0
    %v1091 = vadd.f32 %v1031, %v1079
    %v1092 = vadd.f32 %v1032, %v1080
    %v1093 = vadd.f32 %v1033, %v1081
    %v1094 = vadd.f32 %v1034, %v1082
    %v1095 = vadd.f32 %v1035, %v1083
    %v1096 = vadd.f32 %v1036, %v1084
    %v1097 = vadd.f32 %v1037, %v1085
    %v1098 = vadd.f32 %v1038, %v1086
    %v1099 = vadd.f32 %v1039, %v1087
    %v1100 = vadd.f32 %v1040, %v1088
    %v1101 = vadd.f32 %v1041, %v1089
    %v1102 = vadd.f32 %v1042, %v1090
    %v1103 = vand.u32 2147483647, %v875
    %v1104 = vand.u32 2147483647, %v876
    %v1105 = vand.u32 2147483647, %v877
    %v1106 = vand.u32 2147483647, %v878
    %v1107 = vand.u32 2147483647, %v879
    %v1108 = vand.u32 2147483647, %v880
    %v1109 = vand.u32 2147483647, %v881
    %v1110 = vand.u32 2147483647, %v882
    %v1111 = vand.u32 2147483647, %v883
    %v1112 = vand.u32 2147483647, %v884
    %v1113 = vand.u32 2147483647, %v885
    %v1114 = vand.u32 2147483647, %v886
    %v1115 = vand.u32 2147483647, %v1091
    %v1116 = vand.u32 2147483647, %v1092
    %v1117 = vand.u32 2147483647, %v1093
    %v1118 = vand.u32 2147483647, %v1094
    %v1119 = vand.u32 2147483647, %v1095
    %v1120 = vand.u32 2147483647, %v1096
    %v1121 = vand.u32 2147483647, %v1097
    %v1122 = vand.u32 2147483647, %v1098
    %v1123 = vand.u32 2147483647, %v1099
    %v1124 = vand.u32 2147483647, %v1100
    %v1125 = vand.u32 2147483647, %v1101
    %v1126 = vand.u32 2147483647, %v1102
    %v1127 = vadd.f32 %v1103, %v1115
    %v1128 = vadd.f32 %v1104, %v1116
    %v1129 = vadd.f32 %v1105, %v1117
    %v1130 = vadd.f32 %v1106, %v1118
    %v1131 = vadd.f32 %v1107, %v1119
    %v1132 = vadd.f32 %v1108, %v1120
    %v1133 = vadd.f32 %v1109, %v1121
    %v1134 = vadd.f32 %v1110, %v1122
    %v1135 = vadd.f32 %v1111, %v1123
    %v1136 = vadd.f32 %v1112, %v1124
    %v1137 = vadd.f32 %v1113, %v1125
    %v1138 = vadd.f32 %v1114, %v1126
    %1139 = vrot.lane.b32.xlu0 %v52, 16
    %v1140 = vpop.permute.xlu0 %1139
    %v1141 = vsel %vm226, %v1140, %v52
    %1142 = vrot.lane.b32.xlu0 %v53, 16
    %v1143 = vpop.permute.xlu0 %1142
    %v1144 = vsel %vm226, %v1143, %v53
    %1145 = vrot.lane.b32.xlu0 %v54, 16
    %v1146 = vpop.permute.xlu0 %1145
    %v1147 = vsel %vm226, %v1146, %v54
    %1148 = vrot.lane.b32.xlu0 %v55, 16
    %v1149 = vpop.permute.xlu0 %1148
    %v1150 = vsel %vm226, %v1149, %v55
    %1151 = vrot.lane.b32.xlu0 %v56, 16
    %v1152 = vpop.permute.xlu0 %1151
    %v1153 = vsel %vm226, %v1152, %v56
    %1154 = vrot.lane.b32.xlu0 %v57, 16
    %v1155 = vpop.permute.xlu0 %1154
    %v1156 = vsel %vm226, %v1155, %v57
    %1157 = vrot.lane.b32.xlu0 %v58, 16
    %v1158 = vpop.permute.xlu0 %1157
    %v1159 = vsel %vm226, %v1158, %v58
    %1160 = vrot.lane.b32.xlu0 %v59, 16
    %v1161 = vpop.permute.xlu0 %1160
    %v1162 = vsel %vm226, %v1161, %v59
    %1163 = vrot.lane.b32.xlu0 %v60, 16
    %v1164 = vpop.permute.xlu0 %1163
    %v1165 = vsel %vm226, %v1164, %v60
    %1166 = vrot.lane.b32.xlu0 %v61, 16
    %v1167 = vpop.permute.xlu0 %1166
    %v1168 = vsel %vm226, %v1167, %v61
    %1169 = vrot.lane.b32.xlu0 %v62, 16
    %v1170 = vpop.permute.xlu0 %1169
    %v1171 = vsel %vm226, %v1170, %v62
    %1172 = vrot.lane.b32.xlu0 %v63, 16
    %v1173 = vpop.permute.xlu0 %1172
    %v1174 = vsel %vm226, %v1173, %v63
    %1175 = vrot.lane.b32.xlu0 %v1141, 16
    %v1176 = vpop.permute.xlu0 %1175
    %1177 = vrot.lane.b32.xlu0 %v1144, 16
    %v1178 = vpop.permute.xlu0 %1177
    %1179 = vrot.lane.b32.xlu0 %v1147, 16
    %v1180 = vpop.permute.xlu0 %1179
    %1181 = vrot.lane.b32.xlu0 %v1150, 16
    %v1182 = vpop.permute.xlu0 %1181
    %1183 = vrot.lane.b32.xlu0 %v1153, 16
    %v1184 = vpop.permute.xlu0 %1183
    %1185 = vrot.lane.b32.xlu0 %v1156, 16
    %v1186 = vpop.permute.xlu0 %1185
    %1187 = vrot.lane.b32.xlu0 %v1159, 16
    %v1188 = vpop.permute.xlu0 %1187
    %1189 = vrot.lane.b32.xlu0 %v1162, 16
    %v1190 = vpop.permute.xlu0 %1189
    %1191 = vrot.lane.b32.xlu0 %v1165, 16
    %v1192 = vpop.permute.xlu0 %1191
    %1193 = vrot.lane.b32.xlu0 %v1168, 16
    %v1194 = vpop.permute.xlu0 %1193
    %1195 = vrot.lane.b32.xlu0 %v1171, 16
    %v1196 = vpop.permute.xlu0 %1195
    %1197 = vrot.lane.b32.xlu0 %v1174, 16
    %v1198 = vpop.permute.xlu0 %1197
    %v1199 = vsel %vm226, %v1176, %v52
    %v1200 = vsel %vm226, %v1178, %v53
    %v1201 = vsel %vm226, %v1180, %v54
    %v1202 = vsel %vm226, %v1182, %v55
    %v1203 = vsel %vm226, %v1184, %v56
    %v1204 = vsel %vm226, %v1186, %v57
    %v1205 = vsel %vm226, %v1188, %v58
    %v1206 = vsel %vm226, %v1190, %v59
    %v1207 = vsel %vm226, %v1192, %v60
    %v1208 = vsel %vm226, %v1194, %v61
    %v1209 = vsel %vm226, %v1196, %v62
    %v1210 = vsel %vm226, %v1198, %v63
    %1223 = vrot.lane.b32.xlu0 %v1199, 127
    %v1224 = vpop.permute.xlu0 %1223
    %1225 = vrot.lane.b32.xlu0 %v1200, 127
    %v1226 = vpop.permute.xlu0 %1225
    %1227 = vrot.lane.b32.xlu0 %v1201, 127
    %v1228 = vpop.permute.xlu0 %1227
    %1229 = vrot.lane.b32.xlu0 %v1202, 127
    %v1230 = vpop.permute.xlu0 %1229
    %1231 = vrot.lane.b32.xlu0 %v1203, 127
    %v1232 = vpop.permute.xlu0 %1231
    %1233 = vrot.lane.b32.xlu0 %v1204, 127
    %v1234 = vpop.permute.xlu0 %1233
    %1235 = vrot.lane.b32.xlu0 %v1205, 127
    %v1236 = vpop.permute.xlu0 %1235
    %1237 = vrot.lane.b32.xlu0 %v1206, 127
    %v1238 = vpop.permute.xlu0 %1237
    %1239 = vrot.lane.b32.xlu0 %v1207, 127
    %v1240 = vpop.permute.xlu0 %1239
    %1241 = vrot.lane.b32.xlu0 %v1208, 127
    %v1242 = vpop.permute.xlu0 %1241
    %1243 = vrot.lane.b32.xlu0 %v1209, 127
    %v1244 = vpop.permute.xlu0 %1243
    %1245 = vrot.lane.b32.xlu0 %v1210, 127
    %v1246 = vpop.permute.xlu0 %1245
    %v1259 = vsel %vm374, %v1224, 0.0
    %v1260 = vsel %vm374, %v1226, 0.0
    %v1261 = vsel %vm374, %v1228, 0.0
    %v1262 = vsel %vm374, %v1230, 0.0
    %v1263 = vsel %vm374, %v1232, 0.0
    %v1264 = vsel %vm374, %v1234, 0.0
    %v1265 = vsel %vm374, %v1236, 0.0
    %v1266 = vsel %vm374, %v1238, 0.0
    %v1267 = vsel %vm374, %v1240, 0.0
    %v1268 = vsel %vm374, %v1242, 0.0
    %v1269 = vsel %vm374, %v1244, 0.0
    %v1270 = vsel %vm374, %v1246, 0.0
    %1271 = vrot.lane.b32.xlu0 %v1199, 113
    %v1272 = vpop.permute.xlu0 %1271
    %1273 = vrot.lane.b32.xlu0 %v1200, 113
    %v1274 = vpop.permute.xlu0 %1273
    %1275 = vrot.lane.b32.xlu0 %v1201, 113
    %v1276 = vpop.permute.xlu0 %1275
    %1277 = vrot.lane.b32.xlu0 %v1202, 113
    %v1278 = vpop.permute.xlu0 %1277
    %1279 = vrot.lane.b32.xlu0 %v1203, 113
    %v1280 = vpop.permute.xlu0 %1279
    %1281 = vrot.lane.b32.xlu0 %v1204, 113
    %v1282 = vpop.permute.xlu0 %1281
    %1283 = vrot.lane.b32.xlu0 %v1205, 113
    %v1284 = vpop.permute.xlu0 %1283
    %1285 = vrot.lane.b32.xlu0 %v1206, 113
    %v1286 = vpop.permute.xlu0 %1285
    %1287 = vrot.lane.b32.xlu0 %v1207, 113
    %v1288 = vpop.permute.xlu0 %1287
    %1289 = vrot.lane.b32.xlu0 %v1208, 113
    %v1290 = vpop.permute.xlu0 %1289
    %1291 = vrot.lane.b32.xlu0 %v1209, 113
    %v1292 = vpop.permute.xlu0 %1291
    %1293 = vrot.lane.b32.xlu0 %v1210, 113
    %v1294 = vpop.permute.xlu0 %1293
    %v1307 = vsel %vm300, %v1272, 0.0
    %v1308 = vsel %vm300, %v1274, 0.0
    %v1309 = vsel %vm300, %v1276, 0.0
    %v1310 = vsel %vm300, %v1278, 0.0
    %v1311 = vsel %vm300, %v1280, 0.0
    %v1312 = vsel %vm300, %v1282, 0.0
    %v1313 = vsel %vm300, %v1284, 0.0
    %v1314 = vsel %vm300, %v1286, 0.0
    %v1315 = vsel %vm300, %v1288, 0.0
    %v1316 = vsel %vm300, %v1290, 0.0
    %v1317 = vsel %vm300, %v1292, 0.0
    %v1318 = vsel %vm300, %v1294, 0.0
    %v1319 = vsub.f32 %v1259, %v1307
    %v1320 = vsub.f32 %v1260, %v1308
    %v1321 = vsub.f32 %v1261, %v1309
    %v1322 = vsub.f32 %v1262, %v1310
    %v1323 = vsub.f32 %v1263, %v1311
    %v1324 = vsub.f32 %v1264, %v1312
    %v1325 = vsub.f32 %v1265, %v1313
    %v1326 = vsub.f32 %v1266, %v1314
    %v1327 = vsub.f32 %v1267, %v1315
    %v1328 = vsub.f32 %v1268, %v1316
    %v1329 = vsub.f32 %v1269, %v1317
    %v1330 = vsub.f32 %v1270, %v1318
    %v1331 = vrot.slane %v52, 1
    %v1332 = vrot.slane %v54, 1
    %v1333 = vrot.slane %v56, 1
    %v1334 = vrot.slane %v58, 1
    %v1335 = vrot.slane %v60, 1
    %v1336 = vrot.slane %v62, 1
    %v1337 = vrot.slane %v53, 1
    %v1338 = vrot.slane %v55, 1
    %v1339 = vrot.slane %v57, 1
    %v1340 = vrot.slane %v59, 1
    %v1341 = vrot.slane %v61, 1
    %v1342 = vrot.slane %v63, 1
    %v1343 = vsel %vm185, %v1331, %v1337
    %v1344 = vsel %vm185, %v1332, %v1338
    %v1345 = vsel %vm185, %v1333, %v1339
    %v1346 = vsel %vm185, %v1334, %v1340
    %v1347 = vsel %vm185, %v1335, %v1341
    %v1348 = vsel %vm185, %v1336, %v1342
    %v1349 = vsel %vm185, %v1337, %v1331
    %v1350 = vsel %vm185, %v1338, %v1332
    %v1351 = vsel %vm185, %v1339, %v1333
    %v1352 = vsel %vm185, %v1340, %v1334
    %v1353 = vsel %vm185, %v1341, %v1335
    %v1354 = vsel %vm185, %v1342, %v1336
    %v1355 = vsel %vm200, %v1343, 0.0
    %v1356 = vsel %vm201, %v1349, 0.0
    %v1357 = vsel %vm200, %v1344, 0.0
    %v1358 = vsel %vm201, %v1350, 0.0
    %v1359 = vsel %vm200, %v1345, 0.0
    %v1360 = vsel %vm201, %v1351, 0.0
    %v1361 = vsel %vm200, %v1346, 0.0
    %v1362 = vsel %vm201, %v1352, 0.0
    %v1363 = vsel %vm200, %v1347, 0.0
    %v1364 = vsel %vm201, %v1353, 0.0
    %v1365 = vsel %vm200, %v1348, 0.0
    %v1366 = vsel %vm201, %v1354, 0.0
    %v1367 = vrot.slane %v52, 7
    %v1368 = vrot.slane %v54, 7
    %v1369 = vrot.slane %v56, 7
    %v1370 = vrot.slane %v58, 7
    %v1371 = vrot.slane %v60, 7
    %v1372 = vrot.slane %v62, 7
    %v1373 = vrot.slane %v53, 7
    %v1374 = vrot.slane %v55, 7
    %v1375 = vrot.slane %v57, 7
    %v1376 = vrot.slane %v59, 7
    %v1377 = vrot.slane %v61, 7
    %v1378 = vrot.slane %v63, 7
    %v1379 = vsel %vm144, %v1367, %v1373
    %v1380 = vsel %vm144, %v1368, %v1374
    %v1381 = vsel %vm144, %v1369, %v1375
    %v1382 = vsel %vm144, %v1370, %v1376
    %v1383 = vsel %vm144, %v1371, %v1377
    %v1384 = vsel %vm144, %v1372, %v1378
    %v1385 = vsel %vm144, %v1373, %v1367
    %v1386 = vsel %vm144, %v1374, %v1368
    %v1387 = vsel %vm144, %v1375, %v1369
    %v1388 = vsel %vm144, %v1376, %v1370
    %v1389 = vsel %vm144, %v1377, %v1371
    %v1390 = vsel %vm144, %v1378, %v1372
    %v1391 = vsel %vm159, %v1385, 0.0
    %v1392 = vsel %vm160, %v1379, 0.0
    %v1393 = vsel %vm159, %v1386, 0.0
    %v1394 = vsel %vm160, %v1380, 0.0
    %v1395 = vsel %vm159, %v1387, 0.0
    %v1396 = vsel %vm160, %v1381, 0.0
    %v1397 = vsel %vm159, %v1388, 0.0
    %v1398 = vsel %vm160, %v1382, 0.0
    %v1399 = vsel %vm159, %v1389, 0.0
    %v1400 = vsel %vm160, %v1383, 0.0
    %v1401 = vsel %vm159, %v1390, 0.0
    %v1402 = vsel %vm160, %v1384, 0.0
    %v1403 = vsub.f32 %v1355, %v1391
    %v1404 = vsub.f32 %v1356, %v1392
    %v1405 = vsub.f32 %v1357, %v1393
    %v1406 = vsub.f32 %v1358, %v1394
    %v1407 = vsub.f32 %v1359, %v1395
    %v1408 = vsub.f32 %v1360, %v1396
    %v1409 = vsub.f32 %v1361, %v1397
    %v1410 = vsub.f32 %v1362, %v1398
    %v1411 = vsub.f32 %v1363, %v1399
    %v1412 = vsub.f32 %v1364, %v1400
    %v1413 = vsub.f32 %v1365, %v1401
    %v1414 = vsub.f32 %v1366, %v1402
    %v1415 = vrot.slane %v1319, 7
    %v1416 = vrot.slane %v1321, 7
    %v1417 = vrot.slane %v1323, 7
    %v1418 = vrot.slane %v1325, 7
    %v1419 = vrot.slane %v1327, 7
    %v1420 = vrot.slane %v1329, 7
    %v1421 = vrot.slane %v1320, 7
    %v1422 = vrot.slane %v1322, 7
    %v1423 = vrot.slane %v1324, 7
    %v1424 = vrot.slane %v1326, 7
    %v1425 = vrot.slane %v1328, 7
    %v1426 = vrot.slane %v1330, 7
    %v1427 = vsel %vm144, %v1415, %v1421
    %v1428 = vsel %vm144, %v1416, %v1422
    %v1429 = vsel %vm144, %v1417, %v1423
    %v1430 = vsel %vm144, %v1418, %v1424
    %v1431 = vsel %vm144, %v1419, %v1425
    %v1432 = vsel %vm144, %v1420, %v1426
    %v1433 = vsel %vm144, %v1421, %v1415
    %v1434 = vsel %vm144, %v1422, %v1416
    %v1435 = vsel %vm144, %v1423, %v1417
    %v1436 = vsel %vm144, %v1424, %v1418
    %v1437 = vsel %vm144, %v1425, %v1419
    %v1438 = vsel %vm144, %v1426, %v1420
    %v1439 = vsel %vm159, %v1433, 0.0
    %v1440 = vsel %vm160, %v1427, 0.0
    %v1441 = vsel %vm159, %v1434, 0.0
    %v1442 = vsel %vm160, %v1428, 0.0
    %v1443 = vsel %vm159, %v1435, 0.0
    %v1444 = vsel %vm160, %v1429, 0.0
    %v1445 = vsel %vm159, %v1436, 0.0
    %v1446 = vsel %vm160, %v1430, 0.0
    %v1447 = vsel %vm159, %v1437, 0.0
    %v1448 = vsel %vm160, %v1431, 0.0
    %v1449 = vsel %vm159, %v1438, 0.0
    %v1450 = vsel %vm160, %v1432, 0.0
    %v1451 = vmul.f32 %v1319, 2.0
    %v1452 = vmul.f32 %v1320, 2.0
    %v1453 = vmul.f32 %v1321, 2.0
    %v1454 = vmul.f32 %v1322, 2.0
    %v1455 = vmul.f32 %v1323, 2.0
    %v1456 = vmul.f32 %v1324, 2.0
    %v1457 = vmul.f32 %v1325, 2.0
    %v1458 = vmul.f32 %v1326, 2.0
    %v1459 = vmul.f32 %v1327, 2.0
    %v1460 = vmul.f32 %v1328, 2.0
    %v1461 = vmul.f32 %v1329, 2.0
    %v1462 = vmul.f32 %v1330, 2.0
    %v1463 = vadd.f32 %v1439, %v1451
    %v1464 = vadd.f32 %v1440, %v1452
    %v1465 = vadd.f32 %v1441, %v1453
    %v1466 = vadd.f32 %v1442, %v1454
    %v1467 = vadd.f32 %v1443, %v1455
    %v1468 = vadd.f32 %v1444, %v1456
    %v1469 = vadd.f32 %v1445, %v1457
    %v1470 = vadd.f32 %v1446, %v1458
    %v1471 = vadd.f32 %v1447, %v1459
    %v1472 = vadd.f32 %v1448, %v1460
    %v1473 = vadd.f32 %v1449, %v1461
    %v1474 = vadd.f32 %v1450, %v1462
    %v1475 = vrot.slane %v1319, 1
    %v1476 = vrot.slane %v1321, 1
    %v1477 = vrot.slane %v1323, 1
    %v1478 = vrot.slane %v1325, 1
    %v1479 = vrot.slane %v1327, 1
    %v1480 = vrot.slane %v1329, 1
    %v1481 = vrot.slane %v1320, 1
    %v1482 = vrot.slane %v1322, 1
    %v1483 = vrot.slane %v1324, 1
    %v1484 = vrot.slane %v1326, 1
    %v1485 = vrot.slane %v1328, 1
    %v1486 = vrot.slane %v1330, 1
    %v1487 = vsel %vm185, %v1475, %v1481
    %v1488 = vsel %vm185, %v1476, %v1482
    %v1489 = vsel %vm185, %v1477, %v1483
    %v1490 = vsel %vm185, %v1478, %v1484
    %v1491 = vsel %vm185, %v1479, %v1485
    %v1492 = vsel %vm185, %v1480, %v1486
    %v1493 = vsel %vm185, %v1481, %v1475
    %v1494 = vsel %vm185, %v1482, %v1476
    %v1495 = vsel %vm185, %v1483, %v1477
    %v1496 = vsel %vm185, %v1484, %v1478
    %v1497 = vsel %vm185, %v1485, %v1479
    %v1498 = vsel %vm185, %v1486, %v1480
    %v1499 = vsel %vm200, %v1487, 0.0
    %v1500 = vsel %vm201, %v1493, 0.0
    %v1501 = vsel %vm200, %v1488, 0.0
    %v1502 = vsel %vm201, %v1494, 0.0
    %v1503 = vsel %vm200, %v1489, 0.0
    %v1504 = vsel %vm201, %v1495, 0.0
    %v1505 = vsel %vm200, %v1490, 0.0
    %v1506 = vsel %vm201, %v1496, 0.0
    %v1507 = vsel %vm200, %v1491, 0.0
    %v1508 = vsel %vm201, %v1497, 0.0
    %v1509 = vsel %vm200, %v1492, 0.0
    %v1510 = vsel %vm201, %v1498, 0.0
    %v1511 = vadd.f32 %v1463, %v1499
    %v1512 = vadd.f32 %v1464, %v1500
    %v1513 = vadd.f32 %v1465, %v1501
    %v1514 = vadd.f32 %v1466, %v1502
    %v1515 = vadd.f32 %v1467, %v1503
    %v1516 = vadd.f32 %v1468, %v1504
    %v1517 = vadd.f32 %v1469, %v1505
    %v1518 = vadd.f32 %v1470, %v1506
    %v1519 = vadd.f32 %v1471, %v1507
    %v1520 = vadd.f32 %v1472, %v1508
    %v1521 = vadd.f32 %v1473, %v1509
    %v1522 = vadd.f32 %v1474, %v1510
    %1523 = vrot.lane.b32.xlu0 %v1403, 16
    %v1524 = vpop.permute.xlu0 %1523
    %v1525 = vsel %vm226, %v1524, %v1403
    %1526 = vrot.lane.b32.xlu0 %v1404, 16
    %v1527 = vpop.permute.xlu0 %1526
    %v1528 = vsel %vm226, %v1527, %v1404
    %1529 = vrot.lane.b32.xlu0 %v1405, 16
    %v1530 = vpop.permute.xlu0 %1529
    %v1531 = vsel %vm226, %v1530, %v1405
    %1532 = vrot.lane.b32.xlu0 %v1406, 16
    %v1533 = vpop.permute.xlu0 %1532
    %v1534 = vsel %vm226, %v1533, %v1406
    %1535 = vrot.lane.b32.xlu0 %v1407, 16
    %v1536 = vpop.permute.xlu0 %1535
    %v1537 = vsel %vm226, %v1536, %v1407
    %1538 = vrot.lane.b32.xlu0 %v1408, 16
    %v1539 = vpop.permute.xlu0 %1538
    %v1540 = vsel %vm226, %v1539, %v1408
    %1541 = vrot.lane.b32.xlu0 %v1409, 16
    %v1542 = vpop.permute.xlu0 %1541
    %v1543 = vsel %vm226, %v1542, %v1409
    %1544 = vrot.lane.b32.xlu0 %v1410, 16
    %v1545 = vpop.permute.xlu0 %1544
    %v1546 = vsel %vm226, %v1545, %v1410
    %1547 = vrot.lane.b32.xlu0 %v1411, 16
    %v1548 = vpop.permute.xlu0 %1547
    %v1549 = vsel %vm226, %v1548, %v1411
    %1550 = vrot.lane.b32.xlu0 %v1412, 16
    %v1551 = vpop.permute.xlu0 %1550
    %v1552 = vsel %vm226, %v1551, %v1412
    %1553 = vrot.lane.b32.xlu0 %v1413, 16
    %v1554 = vpop.permute.xlu0 %1553
    %v1555 = vsel %vm226, %v1554, %v1413
    %1556 = vrot.lane.b32.xlu0 %v1414, 16
    %v1557 = vpop.permute.xlu0 %1556
    %v1558 = vsel %vm226, %v1557, %v1414
    %1559 = vrot.lane.b32.xlu0 %v1525, 16
    %v1560 = vpop.permute.xlu0 %1559
    %1561 = vrot.lane.b32.xlu0 %v1528, 16
    %v1562 = vpop.permute.xlu0 %1561
    %1563 = vrot.lane.b32.xlu0 %v1531, 16
    %v1564 = vpop.permute.xlu0 %1563
    %1565 = vrot.lane.b32.xlu0 %v1534, 16
    %v1566 = vpop.permute.xlu0 %1565
    %1567 = vrot.lane.b32.xlu0 %v1537, 16
    %v1568 = vpop.permute.xlu0 %1567
    %1569 = vrot.lane.b32.xlu0 %v1540, 16
    %v1570 = vpop.permute.xlu0 %1569
    %1571 = vrot.lane.b32.xlu0 %v1543, 16
    %v1572 = vpop.permute.xlu0 %1571
    %1573 = vrot.lane.b32.xlu0 %v1546, 16
    %v1574 = vpop.permute.xlu0 %1573
    %1575 = vrot.lane.b32.xlu0 %v1549, 16
    %v1576 = vpop.permute.xlu0 %1575
    %1577 = vrot.lane.b32.xlu0 %v1552, 16
    %v1578 = vpop.permute.xlu0 %1577
    %1579 = vrot.lane.b32.xlu0 %v1555, 16
    %v1580 = vpop.permute.xlu0 %1579
    %1581 = vrot.lane.b32.xlu0 %v1558, 16
    %v1582 = vpop.permute.xlu0 %1581
    %v1583 = vsel %vm226, %v1560, %v1403
    %v1584 = vsel %vm226, %v1562, %v1404
    %v1585 = vsel %vm226, %v1564, %v1405
    %v1586 = vsel %vm226, %v1566, %v1406
    %v1587 = vsel %vm226, %v1568, %v1407
    %v1588 = vsel %vm226, %v1570, %v1408
    %v1589 = vsel %vm226, %v1572, %v1409
    %v1590 = vsel %vm226, %v1574, %v1410
    %v1591 = vsel %vm226, %v1576, %v1411
    %v1592 = vsel %vm226, %v1578, %v1412
    %v1593 = vsel %vm226, %v1580, %v1413
    %v1594 = vsel %vm226, %v1582, %v1414
    %1607 = vrot.lane.b32.xlu0 %v1583, 113
    %v1608 = vpop.permute.xlu0 %1607
    %1609 = vrot.lane.b32.xlu0 %v1584, 113
    %v1610 = vpop.permute.xlu0 %1609
    %1611 = vrot.lane.b32.xlu0 %v1585, 113
    %v1612 = vpop.permute.xlu0 %1611
    %1613 = vrot.lane.b32.xlu0 %v1586, 113
    %v1614 = vpop.permute.xlu0 %1613
    %1615 = vrot.lane.b32.xlu0 %v1587, 113
    %v1616 = vpop.permute.xlu0 %1615
    %1617 = vrot.lane.b32.xlu0 %v1588, 113
    %v1618 = vpop.permute.xlu0 %1617
    %1619 = vrot.lane.b32.xlu0 %v1589, 113
    %v1620 = vpop.permute.xlu0 %1619
    %1621 = vrot.lane.b32.xlu0 %v1590, 113
    %v1622 = vpop.permute.xlu0 %1621
    %1623 = vrot.lane.b32.xlu0 %v1591, 113
    %v1624 = vpop.permute.xlu0 %1623
    %1625 = vrot.lane.b32.xlu0 %v1592, 113
    %v1626 = vpop.permute.xlu0 %1625
    %1627 = vrot.lane.b32.xlu0 %v1593, 113
    %v1628 = vpop.permute.xlu0 %1627
    %1629 = vrot.lane.b32.xlu0 %v1594, 113
    %v1630 = vpop.permute.xlu0 %1629
    %v1643 = vsel %vm300, %v1608, 0.0
    %v1644 = vsel %vm300, %v1610, 0.0
    %v1645 = vsel %vm300, %v1612, 0.0
    %v1646 = vsel %vm300, %v1614, 0.0
    %v1647 = vsel %vm300, %v1616, 0.0
    %v1648 = vsel %vm300, %v1618, 0.0
    %v1649 = vsel %vm300, %v1620, 0.0
    %v1650 = vsel %vm300, %v1622, 0.0
    %v1651 = vsel %vm300, %v1624, 0.0
    %v1652 = vsel %vm300, %v1626, 0.0
    %v1653 = vsel %vm300, %v1628, 0.0
    %v1654 = vsel %vm300, %v1630, 0.0
    %v1655 = vmul.f32 %v1403, 2.0
    %v1656 = vmul.f32 %v1404, 2.0
    %v1657 = vmul.f32 %v1405, 2.0
    %v1658 = vmul.f32 %v1406, 2.0
    %v1659 = vmul.f32 %v1407, 2.0
    %v1660 = vmul.f32 %v1408, 2.0
    %v1661 = vmul.f32 %v1409, 2.0
    %v1662 = vmul.f32 %v1410, 2.0
    %v1663 = vmul.f32 %v1411, 2.0
    %v1664 = vmul.f32 %v1412, 2.0
    %v1665 = vmul.f32 %v1413, 2.0
    %v1666 = vmul.f32 %v1414, 2.0
    %v1667 = vadd.f32 %v1643, %v1655
    %v1668 = vadd.f32 %v1644, %v1656
    %v1669 = vadd.f32 %v1645, %v1657
    %v1670 = vadd.f32 %v1646, %v1658
    %v1671 = vadd.f32 %v1647, %v1659
    %v1672 = vadd.f32 %v1648, %v1660
    %v1673 = vadd.f32 %v1649, %v1661
    %v1674 = vadd.f32 %v1650, %v1662
    %v1675 = vadd.f32 %v1651, %v1663
    %v1676 = vadd.f32 %v1652, %v1664
    %v1677 = vadd.f32 %v1653, %v1665
    %v1678 = vadd.f32 %v1654, %v1666
    %1679 = vrot.lane.b32.xlu0 %v1583, 127
    %v1680 = vpop.permute.xlu0 %1679
    %1681 = vrot.lane.b32.xlu0 %v1584, 127
    %v1682 = vpop.permute.xlu0 %1681
    %1683 = vrot.lane.b32.xlu0 %v1585, 127
    %v1684 = vpop.permute.xlu0 %1683
    %1685 = vrot.lane.b32.xlu0 %v1586, 127
    %v1686 = vpop.permute.xlu0 %1685
    %1687 = vrot.lane.b32.xlu0 %v1587, 127
    %v1688 = vpop.permute.xlu0 %1687
    %1689 = vrot.lane.b32.xlu0 %v1588, 127
    %v1690 = vpop.permute.xlu0 %1689
    %1691 = vrot.lane.b32.xlu0 %v1589, 127
    %v1692 = vpop.permute.xlu0 %1691
    %1693 = vrot.lane.b32.xlu0 %v1590, 127
    %v1694 = vpop.permute.xlu0 %1693
    %1695 = vrot.lane.b32.xlu0 %v1591, 127
    %v1696 = vpop.permute.xlu0 %1695
    %1697 = vrot.lane.b32.xlu0 %v1592, 127
    %v1698 = vpop.permute.xlu0 %1697
    %1699 = vrot.lane.b32.xlu0 %v1593, 127
    %v1700 = vpop.permute.xlu0 %1699
    %1701 = vrot.lane.b32.xlu0 %v1594, 127
    %v1702 = vpop.permute.xlu0 %1701
    %v1715 = vsel %vm374, %v1680, 0.0
    %v1716 = vsel %vm374, %v1682, 0.0
    %v1717 = vsel %vm374, %v1684, 0.0
    %v1718 = vsel %vm374, %v1686, 0.0
    %v1719 = vsel %vm374, %v1688, 0.0
    %v1720 = vsel %vm374, %v1690, 0.0
    %v1721 = vsel %vm374, %v1692, 0.0
    %v1722 = vsel %vm374, %v1694, 0.0
    %v1723 = vsel %vm374, %v1696, 0.0
    %v1724 = vsel %vm374, %v1698, 0.0
    %v1725 = vsel %vm374, %v1700, 0.0
    %v1726 = vsel %vm374, %v1702, 0.0
    %v1727 = vadd.f32 %v1667, %v1715
    %v1728 = vadd.f32 %v1668, %v1716
    %v1729 = vadd.f32 %v1669, %v1717
    %v1730 = vadd.f32 %v1670, %v1718
    %v1731 = vadd.f32 %v1671, %v1719
    %v1732 = vadd.f32 %v1672, %v1720
    %v1733 = vadd.f32 %v1673, %v1721
    %v1734 = vadd.f32 %v1674, %v1722
    %v1735 = vadd.f32 %v1675, %v1723
    %v1736 = vadd.f32 %v1676, %v1724
    %v1737 = vadd.f32 %v1677, %v1725
    %v1738 = vadd.f32 %v1678, %v1726
    %v1739 = vand.u32 2147483647, %v1511
    %v1740 = vand.u32 2147483647, %v1512
    %v1741 = vand.u32 2147483647, %v1513
    %v1742 = vand.u32 2147483647, %v1514
    %v1743 = vand.u32 2147483647, %v1515
    %v1744 = vand.u32 2147483647, %v1516
    %v1745 = vand.u32 2147483647, %v1517
    %v1746 = vand.u32 2147483647, %v1518
    %v1747 = vand.u32 2147483647, %v1519
    %v1748 = vand.u32 2147483647, %v1520
    %v1749 = vand.u32 2147483647, %v1521
    %v1750 = vand.u32 2147483647, %v1522
    %v1751 = vand.u32 2147483647, %v1727
    %v1752 = vand.u32 2147483647, %v1728
    %v1753 = vand.u32 2147483647, %v1729
    %v1754 = vand.u32 2147483647, %v1730
    %v1755 = vand.u32 2147483647, %v1731
    %v1756 = vand.u32 2147483647, %v1732
    %v1757 = vand.u32 2147483647, %v1733
    %v1758 = vand.u32 2147483647, %v1734
    %v1759 = vand.u32 2147483647, %v1735
    %v1760 = vand.u32 2147483647, %v1736
    %v1761 = vand.u32 2147483647, %v1737
    %v1762 = vand.u32 2147483647, %v1738
    %v1763 = vadd.f32 %v1739, %v1751
    %v1764 = vadd.f32 %v1740, %v1752
    %v1765 = vadd.f32 %v1741, %v1753
    %v1766 = vadd.f32 %v1742, %v1754
    %v1767 = vadd.f32 %v1743, %v1755
    %v1768 = vadd.f32 %v1744, %v1756
    %v1769 = vadd.f32 %v1745, %v1757
    %v1770 = vadd.f32 %v1746, %v1758
    %v1771 = vadd.f32 %v1747, %v1759
    %v1772 = vadd.f32 %v1748, %v1760
    %v1773 = vadd.f32 %v1749, %v1761
    %v1774 = vadd.f32 %v1750, %v1762
    %v1775 = vsub.f32 %v1127, %v1763
    %v1776 = vsub.f32 %v1128, %v1764
    %v1777 = vsub.f32 %v1129, %v1765
    %v1778 = vsub.f32 %v1130, %v1766
    %v1779 = vsub.f32 %v1131, %v1767
    %v1780 = vsub.f32 %v1132, %v1768
    %v1781 = vsub.f32 %v1133, %v1769
    %v1782 = vsub.f32 %v1134, %v1770
    %v1783 = vsub.f32 %v1135, %v1771
    %v1784 = vsub.f32 %v1136, %v1772
    %v1785 = vsub.f32 %v1137, %v1773
    %v1786 = vsub.f32 %v1138, %v1774
    %v1787 = vand.u32 2147483647, %v1775
    %v1788 = vand.u32 2147483647, %v1776
    %v1789 = vand.u32 2147483647, %v1777
    %v1790 = vand.u32 2147483647, %v1778
    %v1791 = vand.u32 2147483647, %v1779
    %v1792 = vand.u32 2147483647, %v1780
    %v1793 = vand.u32 2147483647, %v1781
    %v1794 = vand.u32 2147483647, %v1782
    %v1795 = vand.u32 2147483647, %v1783
    %v1796 = vand.u32 2147483647, %v1784
    %v1797 = vand.u32 2147483647, %v1785
    %v1798 = vand.u32 2147483647, %v1786
    %v1799 = vsel %vm99, %v1787, 0.0
    %v1800 = vsel %vm99, %v1788, 0.0
    %v1801 = vadd.f32 %v1799, %v1800
    %v1802 = vsel %vm99, %v1789, 0.0
    %v1803 = vadd.f32 %v1801, %v1802
    %v1804 = vsel %vm99, %v1790, 0.0
    %v1805 = vadd.f32 %v1803, %v1804
    %v1806 = vsel %vm99, %v1791, 0.0
    %v1807 = vadd.f32 %v1805, %v1806
    %v1808 = vsel %vm99, %v1792, 0.0
    %v1809 = vadd.f32 %v1807, %v1808
    %v1810 = vsel %vm99, %v1793, 0.0
    %v1811 = vadd.f32 %v1809, %v1810
    %v1812 = vsel %vm99, %v1794, 0.0
    %v1813 = vadd.f32 %v1811, %v1812
    %v1814 = vsel %vm99, %v1795, 0.0
    %v1815 = vadd.f32 %v1813, %v1814
    %v1816 = vsel %vm99, %v1796, 0.0
    %v1817 = vadd.f32 %v1815, %v1816
    %v1818 = vsel %vm99, %v1797, 0.0
    %v1819 = vadd.f32 %v1817, %v1818
    %v1820 = vsel %vm99, %v1798, 0.0
    %v1821 = vadd.f32 %v1819, %v1820
    %1822 = vadd.xlane.f32.xlu0 %v1821
    %v1823 = vpop.xlane.xlu0 %1822
    %v1824 = vrot.slane %v1823, 4
    %v1825 = vadd.f32 %v1823, %v1824
    %v1826 = vrot.slane %v1825, 2
    %v1827 = vadd.f32 %v1825, %v1826
    %v1828 = vrot.slane %v1827, 1
    %v1829 = vadd.f32 %v1827, %v1828
    %s1830 = vtos %v1829
    %vm1831 = vcmp.eq.s32.totalorder %v65, 0
    %vm1832 = vcmp.eq.s32.totalorder %v68, 0
    %vm1833 = vmand %vm1831, %vm1832
    %v1834 = vstv %s131
    %v1835 = vsel %vm1833, %v1834, 0.0
    %vm1836 = vcmp.eq.s32.totalorder %v68, 1
    %vm1837 = vmand %vm1831, %vm1836
    %v1838 = vstv %s502
    %v1839 = vsel %vm1837, %v1838, %v1835
    %vm1840 = vcmp.eq.s32.totalorder %v68, 2
    %vm1841 = vmand %vm1831, %vm1840
    %v1842 = vstv %s1830
    %v1843 = vsel %vm1841, %v1842, %v1839
    %1844 = vst [vmem:[#allocation7] sm:$0xff] %v1843
    // Predicated region
    $region18: #{my_loss.1} parent=1 // pred_check
      _
    $region19: #{my_loss.1} parent=1 // pred_check_branch
      %1846 = sbr.rel (0) target = $region21
    $region20: #{my_loss.1} parent=1 // pred_region
      %s1848 = ssub.s32 128, 128
      %1849 = vsyncadd [#allocation4], %s1848
      %s1851 = sshll.u32 [#allocation7], 4
      %s1852 = int_to_ptr.vmem [resolvable:$true] %s1851
      %1854 = dma.vmem_to_hbm [thread:$0]  %s1852, 128, %s2, [#allocation4]
    $region21: #{my_loss.1} parent=1 // pred_fallthru
      _
    // Predicated region
    $region22: #{my_loss.1} parent=1 // pred_check
      _
    $region23: #{my_loss.1} parent=1 // pred_check_branch
      %1856 = sbr.rel (0) target = $region25
    $region24: #{my_loss.1} parent=1 // pred_region
      %1857 = dma.done [#allocation4], 128
    $region25: #{my_loss.1} parent=1 // pred_fallthru
      _
    %1858 = vsyncpa [#allocation3], 1
    %1859 = vsyncpa [#allocation6], 1
    %1860 = vsyncpa [#allocation4], 1

</llo_original>
